<compile_context>
chip_gen: v7x
topology: tpu7x:2x2x1
jax: 0.10.0
libtpu: 0.0.40
codegen_flags: <defaults>
</compile_context>

<pallas_src>
import functools

import jax
import jax.numpy as jnp
from jax.experimental import pallas as pl
from jax.experimental.pallas import tpu as pltpu

_VMEM_LIMIT_BYTES = 32 * 1024 * 1024  # safe on v5e/v6e/v7x; tiles here are tiny


def _conv_pool_stats_kernel(xm_ref, xt_ref, xb_ref, w_ref, y_ref, stats_ref, *, d):
    """Per-tile conv3x3 (im2col, bf16 MXU) + avg-pool + BN partial sums.

    xm_ref:    (1, THc, W, Cin)   this tile's conv rows
    xt_ref:    (1, 1,  W, Cin)    row above the tile (clamped; zeroed at top)
    xb_ref:    (1, 1,  W, Cin)    row below the tile (clamped; zeroed at bottom)
    w_ref:     (9*Cin, Coutp)     im2col weights, bf16
    y_ref:     (1, THo, Wo, Coutp) pooled conv output (pre-BN), f32
    stats_ref: (1, 1, 2, Coutp)   per-tile [sum; sum_of_squares] per channel
    """
    _, thc, w_dim, cin = xm_ref.shape
    coutp = w_ref.shape[-1]
    tho, wo = thc // d, w_dim // d

    i = pl.program_id(1)
    nrb = pl.num_programs(1)

    xm = xm_ref[0]                                   # (THc, W, Cin)
    top = xt_ref[0]                                  # (1, W, Cin)
    bot = xb_ref[0]                                  # (1, W, Cin)
    # Zero-fill the halo rows at the image borders (conv padding=1 in H).
    top = top * (i > 0).astype(xm.dtype)
    bot = bot * (i < nrb - 1).astype(xm.dtype)

    xwin = jnp.concatenate([top, xm, bot], axis=0)   # (THc+2, W, Cin)
    zcol = jnp.zeros((thc + 2, 1, cin), xwin.dtype)
    xwin = jnp.concatenate([zcol, xwin, zcol], axis=1)  # (THc+2, W+2, Cin)

    # im2col: one deep-K MXU matmul (K = 9*Cin) instead of 9 shallow taps.
    cols = [xwin[dh:dh + thc, dw:dw + w_dim, :].reshape(thc * w_dim, cin)
            for dh in range(3) for dw in range(3)]
    patch = jnp.concatenate(cols, axis=-1).astype(jnp.bfloat16)   # (THc*W, 9*Cin)

    y = jnp.dot(patch, w_ref[...], preferred_element_type=jnp.float32)
    y = y.reshape(thc, w_dim, coutp)

    if d != 1:                                       # F.avg_pool2d(kernel=stride=d)
        y = y.reshape(thc, wo, d, coutp).sum(axis=2)
        y = y.reshape(tho, d, wo, coutp).sum(axis=1)
        y = y * (1.0 / (d * d))
    y = y.reshape(tho, wo, coutp)

    # Per-tile BN partials via a ones-row matmul so the row-reduction rides on
    # the otherwise-idle MXU instead of the XLU (8 identical rows = MXU min M).
    yf = y.reshape(tho * wo, coutp)
    ones = jnp.ones((8, tho * wo), jnp.float32)
    ssum = jnp.dot(ones, yf, preferred_element_type=jnp.float32)[0:1]       # (1, Coutp)
    ssq = jnp.dot(ones, yf * yf, preferred_element_type=jnp.float32)[0:1]   # (1, Coutp)

    y_ref[0] = y.astype(y_ref.dtype)
    stats_ref[0, 0] = jnp.concatenate([ssum, ssq], axis=0)


def _bn_act_kernel(y_ref, scale_ref, shift_ref, o_ref, *, negative_slope, apply_act):
    """Elementwise BN (folded scale/shift) + optional LeakyReLU, lane-dense."""
    scale = scale_ref[...].reshape(1, 1, 1, -1)
    shift = shift_ref[...].reshape(1, 1, 1, -1)
    out = y_ref[...] * scale + shift
    if apply_act:
        out = jnp.where(out >= 0, out, negative_slope * out)
    o_ref[...] = out.astype(o_ref.dtype)


def same_block_forward(x_nchw, weight_oihw, gamma, beta,
                       downsample_factor=1, drop_final_activation=False,
                       eps=1e-5, rows_per_tile=8):
    """Pallas SameBlock forward. x_nchw: (N, Cin, H, W), weight: (Cout, Cin, 3, 3)."""
    N, Cin, H, W = x_nchw.shape
    Cout = weight_oihw.shape[0]
    d = downsample_factor
    assert H % d == 0 and W % d == 0
    Ho, Wo = H // d, W // d

    thc = min(rows_per_tile, H)          # conv rows per tile (halve for v7x if large)
    assert H % thc == 0 and thc % d == 0
    nrb = H // thc
    tho = thc // d

    coutp = ((Cout + 127) // 128) * 128  # lane-dense channel dim inside kernels

    # Boundary glue: channels-last for the kernels; weights folded for im2col.
    x = jnp.transpose(x_nchw, (0, 2, 3, 1))                             # (N, H, W, Cin)
    w = jnp.transpose(weight_oihw, (2, 3, 1, 0)).reshape(9 * Cin, Cout)
    w = jnp.pad(w, ((0, 0), (0, coutp - Cout))).astype(jnp.bfloat16)    # (9*Cin, Coutp)
    g = jnp.pad(gamma.astype(jnp.float32), (0, coutp - Cout))
    b = jnp.pad(beta.astype(jnp.float32), (0, coutp - Cout))

    # ---- pass 1: conv + pool + BN partial sums ----
    conv_kernel = functools.partial(_conv_pool_stats_kernel, d=d)
    y, stats = pl.pallas_call(
        conv_kernel,
        out_shape=(
            jax.ShapeDtypeStruct((N, Ho, Wo, coutp), jnp.float32),
            jax.ShapeDtypeStruct((N, nrb, 2, coutp), jnp.float32),
        ),
        grid=(N, nrb),
        in_specs=[
            pl.BlockSpec((1, thc, W, Cin), lambda n, i: (n, i, 0, 0)),
            pl.BlockSpec((1, 1, W, Cin),
                         lambda n, i: (n, jnp.maximum(i * thc - 1, 0), 0, 0)),
            pl.BlockSpec((1, 1, W, Cin),
                         lambda n, i: (n, jnp.minimum(i * thc + thc, H - 1), 0, 0)),
            pl.BlockSpec((9 * Cin, coutp), lambda n, i: (0, 0)),
        ],
        out_specs=(
            pl.BlockSpec((1, tho, Wo, coutp), lambda n, i: (n, i, 0, 0)),
            pl.BlockSpec((1, 1, 2, coutp), lambda n, i: (n, i, 0, 0)),
        ),
        compiler_params=pltpu.CompilerParams(
            dimension_semantics=("parallel", "parallel"),
            vmem_limit_bytes=_VMEM_LIMIT_BYTES),
    )(x, x, x, w)

    # ---- finalize BN statistics from per-tile partials (tiny, plain JAX) ----
    count = float(N * Ho * Wo)
    ssum = stats[:, :, 0, :].sum(axis=(0, 1))
    ssq = stats[:, :, 1, :].sum(axis=(0, 1))
    mean = ssum / count
    var = jnp.maximum(ssq / count - mean * mean, 0.0)   # clamp: one-pass E[x^2]-E[x]^2
    inv = jax.lax.rsqrt(var + eps)
    scale = (g * inv).reshape(1, coutp)
    shift = (b - mean * g * inv).reshape(1, coutp)

    # ---- pass 2: BN apply + LeakyReLU (cheap tiled elementwise) ----
    bn_kernel = functools.partial(_bn_act_kernel, negative_slope=0.2,
                                  apply_act=not drop_final_activation)
    out_nhwc = pl.pallas_call(
        bn_kernel,
        out_shape=jax.ShapeDtypeStruct((N, Ho, Wo, coutp), jnp.float32),
        grid=(N, nrb),
        in_specs=[
            pl.BlockSpec((1, tho, Wo, coutp), lambda n, i: (n, i, 0, 0)),
            pl.BlockSpec((1, coutp), lambda n, i: (0, 0)),
            pl.BlockSpec((1, coutp), lambda n, i: (0, 0)),
        ],
        out_specs=pl.BlockSpec((1, tho, Wo, coutp), lambda n, i: (n, i, 0, 0)),
        compiler_params=pltpu.CompilerParams(
            dimension_semantics=("parallel", "parallel"),
            vmem_limit_bytes=_VMEM_LIMIT_BYTES),
    )(y, scale, shift)

    # TODO(synk): nn.BatchNorm2d's running_mean/running_var buffer updates are
    # stateful and not represented here (forward output only).
    return jnp.transpose(out_nhwc[..., :Cout], (0, 3, 1, 2))            # back to NCHW


def _reference(x, w, gamma, beta, d, drop_final_activation, eps=1e-5):
    """Pure-JAX f32 reference mirroring the PyTorch forward (train-mode BN)."""
    out = jax.lax.conv_general_dilated(
        x, w, window_strides=(1, 1), padding=((1, 1), (1, 1)),
        dimension_numbers=("NCHW", "OIHW", "NCHW"))
    if d != 1:
        N, C, H, W = out.shape
        out = out.reshape(N, C, H // d, d, W // d, d).mean(axis=(3, 5))
    mean = out.mean(axis=(0, 2, 3), keepdims=True)
    var = ((out - mean) ** 2).mean(axis=(0, 2, 3), keepdims=True)
    out = (out - mean) / jnp.sqrt(var + eps)
    out = out * gamma.reshape(1, -1, 1, 1) + beta.reshape(1, -1, 1, 1)
    if not drop_final_activation:
        out = jnp.where(out >= 0, out, 0.2 * out)
    return out


if __name__ == "__main__":
    key = jax.random.PRNGKey(0)
    k_x, k_w = jax.random.split(key)

    N, Cin, Cout, H, W = 2, 8, 16, 16, 16
    x = jax.random.normal(k_x, (N, Cin, H, W), dtype=jnp.float32)
    weight = 0.1 * jax.random.normal(k_w, (Cout, Cin, 3, 3), dtype=jnp.float32)
    gamma = jnp.linspace(0.5, 1.5, Cout, dtype=jnp.float32)
    beta = jnp.linspace(-0.2, 0.2, Cout, dtype=jnp.float32)

    # Tolerance widened vs. the pure-f32 version because the conv matmul runs
    # on the MXU in bf16 (with f32 accumulation).
    for d, drop_act in [(1, False), (2, False), (1, True)]:
        got = same_block_forward(x, weight, gamma, beta,
                                 downsample_factor=d,
                                 drop_final_activation=drop_act)
        got = jax.block_until_ready(got)
        want = _reference(x, weight, gamma, beta, d, drop_act)
        assert got.shape == want.shape, (got.shape, want.shape)
        err = float(jnp.max(jnp.abs(got - want)))
        assert jnp.allclose(got, want, atol=3e-2, rtol=3e-2), (
            f"mismatch (d={d}, drop_act={drop_act}): max err {err}")

    print("KERNEL_OK")
</pallas_src>

<mosaic_0001>
module attributes {stable_mosaic.version = 11 : i64} {
  func.func @_conv_pool_stats_kernel(%arg0: i32, %arg1: i32, %arg2: memref<1x8x16x8xf32, #tpu.memory_space<vmem>>, %arg3: memref<1x1x16x8xf32, #tpu.memory_space<vmem>>, %arg4: memref<1x1x16x8xf32, #tpu.memory_space<vmem>>, %arg5: memref<72x128xbf16, #tpu.memory_space<vmem>>, %arg6: memref<1x8x16x128xf32, #tpu.memory_space<vmem>>, %arg7: memref<1x1x2x128xf32, #tpu.memory_space<vmem>>) attributes {dimension_semantics = [#tpu.dimension_semantics<parallel>, #tpu.dimension_semantics<parallel>], iteration_bounds = array<i64: 2, 2>, scalar_prefetch = 0 : i64, scratch_operands = 0 : i64, tpu.core_type = #tpu.core_type<tc>, window_params = [{transform_indices = @transform_0, window_bounds = array<i64: 1, 8, 16, 8>}, {transform_indices = @transform_1, window_bounds = array<i64: 1, 1, 16, 8>}, {transform_indices = @transform_2, window_bounds = array<i64: 1, 1, 16, 8>}, {pipeline_mode = #tpu.pipeline_mode<synchronous>, transform_indices = @transform_3, window_bounds = array<i64: 72, 128>}, {transform_indices = @transform_4, window_bounds = array<i64: 1, 8, 16, 128>}, {transform_indices = @transform_5, window_bounds = array<i64: 1, 1, 2, 128>}]} {
    %c0 = arith.constant 0 : index
    %c0_0 = arith.constant 0 : index
    %c0_1 = arith.constant 0 : index
    %c0_2 = arith.constant 0 : index
    %0 = vector.load %arg2[%c0, %c0_0, %c0_1, %c0_2] : memref<1x8x16x8xf32, #tpu.memory_space<vmem>>, vector<1x8x16x8xf32>
    %1 = vector.shape_cast %0 : vector<1x8x16x8xf32> to vector<8x16x8xf32>
    %c0_3 = arith.constant 0 : index
    %c0_4 = arith.constant 0 : index
    %c0_5 = arith.constant 0 : index
    %c0_6 = arith.constant 0 : index
    %2 = vector.load %arg3[%c0_3, %c0_4, %c0_5, %c0_6] : memref<1x1x16x8xf32, #tpu.memory_space<vmem>>, vector<1x1x16x8xf32>
    %3 = vector.shape_cast %2 : vector<1x1x16x8xf32> to vector<1x16x8xf32>
    %c0_7 = arith.constant 0 : index
    %c0_8 = arith.constant 0 : index
    %c0_9 = arith.constant 0 : index
    %c0_10 = arith.constant 0 : index
    %4 = vector.load %arg4[%c0_7, %c0_8, %c0_9, %c0_10] : memref<1x1x16x8xf32, #tpu.memory_space<vmem>>, vector<1x1x16x8xf32>
    %5 = vector.shape_cast %4 : vector<1x1x16x8xf32> to vector<1x16x8xf32>
    %c0_i32 = arith.constant 0 : i32
    %6 = arith.cmpi sgt, %arg1, %c0_i32 : i32
    %7 = arith.extui %6 : i1 to i32
    %8 = arith.sitofp %7 : i32 to f32
    %9 = vector.broadcast %8 : f32 to vector<1x16x8xf32>
    %10 = arith.mulf %3, %9 : vector<1x16x8xf32>
    %c1_i32 = arith.constant 1 : i32
    %11 = arith.cmpi slt, %arg1, %c1_i32 : i32
    %12 = arith.extui %11 : i1 to i32
    %13 = arith.sitofp %12 : i32 to f32
    %14 = vector.broadcast %13 : f32 to vector<1x16x8xf32>
    %15 = arith.mulf %5, %14 : vector<1x16x8xf32>
    %16 = tpu.concatenate %10, %1, %15 in 0 : vector<1x16x8xf32>, vector<8x16x8xf32>, vector<1x16x8xf32> -> vector<10x16x8xf32>
    %cst = arith.constant 0.000000e+00 : f32
    %17 = vector.broadcast %cst : f32 to vector<10x1x8xf32>
    %18 = tpu.concatenate %17, %16, %17 in 1 : vector<10x1x8xf32>, vector<10x16x8xf32>, vector<10x1x8xf32> -> vector<10x18x8xf32>
    %19 = vector.extract_strided_slice %18 {offsets = [0, 0, 0], sizes = [8, 16, 8], strides = [1, 1, 1]} : vector<10x18x8xf32> to vector<8x16x8xf32>
    %20 = vector.shape_cast %19 : vector<8x16x8xf32> to vector<128x8xf32>
    %21 = vector.extract_strided_slice %18 {offsets = [0, 1, 0], sizes = [8, 16, 8], strides = [1, 1, 1]} : vector<10x18x8xf32> to vector<8x16x8xf32>
    %22 = vector.shape_cast %21 : vector<8x16x8xf32> to vector<128x8xf32>
    %23 = vector.extract_strided_slice %18 {offsets = [0, 2, 0], sizes = [8, 16, 8], strides = [1, 1, 1]} : vector<10x18x8xf32> to vector<8x16x8xf32>
    %24 = vector.shape_cast %23 : vector<8x16x8xf32> to vector<128x8xf32>
    %25 = vector.extract_strided_slice %18 {offsets = [1, 0, 0], sizes = [8, 16, 8], strides = [1, 1, 1]} : vector<10x18x8xf32> to vector<8x16x8xf32>
    %26 = vector.shape_cast %25 : vector<8x16x8xf32> to vector<128x8xf32>
    %27 = vector.extract_strided_slice %18 {offsets = [1, 1, 0], sizes = [8, 16, 8], strides = [1, 1, 1]} : vector<10x18x8xf32> to vector<8x16x8xf32>
    %28 = vector.shape_cast %27 : vector<8x16x8xf32> to vector<128x8xf32>
    %29 = vector.extract_strided_slice %18 {offsets = [1, 2, 0], sizes = [8, 16, 8], strides = [1, 1, 1]} : vector<10x18x8xf32> to vector<8x16x8xf32>
    %30 = vector.shape_cast %29 : vector<8x16x8xf32> to vector<128x8xf32>
    %31 = vector.extract_strided_slice %18 {offsets = [2, 0, 0], sizes = [8, 16, 8], strides = [1, 1, 1]} : vector<10x18x8xf32> to vector<8x16x8xf32>
    %32 = vector.shape_cast %31 : vector<8x16x8xf32> to vector<128x8xf32>
    %33 = vector.extract_strided_slice %18 {offsets = [2, 1, 0], sizes = [8, 16, 8], strides = [1, 1, 1]} : vector<10x18x8xf32> to vector<8x16x8xf32>
    %34 = vector.shape_cast %33 : vector<8x16x8xf32> to vector<128x8xf32>
    %35 = vector.extract_strided_slice %18 {offsets = [2, 2, 0], sizes = [8, 16, 8], strides = [1, 1, 1]} : vector<10x18x8xf32> to vector<8x16x8xf32>
    %36 = vector.shape_cast %35 : vector<8x16x8xf32> to vector<128x8xf32>
    %37 = tpu.concatenate %20, %22, %24, %26, %28, %30, %32, %34, %36 in 1 : vector<128x8xf32>, vector<128x8xf32>, vector<128x8xf32>, vector<128x8xf32>, vector<128x8xf32>, vector<128x8xf32>, vector<128x8xf32>, vector<128x8xf32>, vector<128x8xf32> -> vector<128x72xf32>
    %38 = arith.truncf %37 : vector<128x72xf32> to vector<128x72xbf16>
    %c0_11 = arith.constant 0 : index
    %c0_12 = arith.constant 0 : index
    %39 = vector.load %arg5[%c0_11, %c0_12] : memref<72x128xbf16, #tpu.memory_space<vmem>>, vector<72x128xbf16>
    %cst_13 = arith.constant dense<0.000000e+00> : vector<128x128xf32>
    %40 = tpu.matmul %38, %39, %cst_13 {dimension_numbers = #tpu.dot_dimension_numbers<[1], [0], [0], [1], [0, 0, 1, 1], [], []>} : vector<128x72xbf16>, vector<72x128xbf16>, vector<128x128xf32> -> vector<128x128xf32>
    %41 = vector.shape_cast %40 : vector<128x128xf32> to vector<8x16x128xf32>
    %42 = vector.shape_cast %41 : vector<8x16x128xf32> to vector<128x128xf32>
    %cst_14 = arith.constant 1.000000e+00 : f32
    %43 = vector.broadcast %cst_14 : f32 to vector<8x128xf32>
    %cst_15 = arith.constant dense<0.000000e+00> : vector<8x128xf32>
    %44 = tpu.matmul %43, %42, %cst_15 {dimension_numbers = #tpu.dot_dimension_numbers<[1], [0], [0], [1], [0, 0, 1, 1], [], []>} : vector<8x128xf32>, vector<128x128xf32>, vector<8x128xf32> -> vector<8x128xf32>
    %45 = vector.extract_strided_slice %44 {offsets = [0, 0], sizes = [1, 128], strides = [1, 1]} : vector<8x128xf32> to vector<1x128xf32>
    %46 = arith.mulf %42, %42 : vector<128x128xf32>
    %cst_16 = arith.constant dense<0.000000e+00> : vector<8x128xf32>
    %47 = tpu.matmul %43, %46, %cst_16 {dimension_numbers = #tpu.dot_dimension_numbers<[1], [0], [0], [1], [0, 0, 1, 1], [], []>} : vector<8x128xf32>, vector<128x128xf32>, vector<8x128xf32> -> vector<8x128xf32>
    %48 = vector.extract_strided_slice %47 {offsets = [0, 0], sizes = [1, 128], strides = [1, 1]} : vector<8x128xf32> to vector<1x128xf32>
    %c0_17 = arith.constant 0 : index
    %c0_18 = arith.constant 0 : index
    %c0_19 = arith.constant 0 : index
    %c0_20 = arith.constant 0 : index
    %49 = vector.load %arg6[%c0_17, %c0_18, %c0_19, %c0_20] : memref<1x8x16x128xf32, #tpu.memory_space<vmem>>, vector<1x8x16x128xf32>
    %50 = vector.shape_cast %49 : vector<1x8x16x128xf32> to vector<8x16x128xf32>
    %51 = vector.shape_cast %41 : vector<8x16x128xf32> to vector<1x8x16x128xf32>
    tpu.vector_store %arg6[%c0_17, %c0_18, %c0_19, %c0_20], %51 {strides = array<i32>} : memref<1x8x16x128xf32, #tpu.memory_space<vmem>>, vector<1x8x16x128xf32>,
    %52 = tpu.concatenate %45, %48 in 0 : vector<1x128xf32>, vector<1x128xf32> -> vector<2x128xf32>
    %c0_21 = arith.constant 0 : index
    %c0_22 = arith.constant 0 : index
    %c0_23 = arith.constant 0 : index
    %c0_24 = arith.constant 0 : index
    %53 = vector.load %arg7[%c0_21, %c0_22, %c0_23, %c0_24] : memref<1x1x2x128xf32, #tpu.memory_space<vmem>>, vector<1x1x2x128xf32>
    %54 = vector.shape_cast %53 : vector<1x1x2x128xf32> to vector<2x128xf32>
    %55 = vector.shape_cast %52 : vector<2x128xf32> to vector<1x1x2x128xf32>
    tpu.vector_store %arg7[%c0_21, %c0_22, %c0_23, %c0_24], %55 {strides = array<i32>} : memref<1x1x2x128xf32, #tpu.memory_space<vmem>>, vector<1x1x2x128xf32>,
    return
  }
  func.func @transform_0(%arg0: i32, %arg1: i32) -> (i32, i32, i32, i32) {
    %c0_i32 = arith.constant 0 : i32
    %c0_i32_0 = arith.constant 0 : i32
    %c0_i32_1 = arith.constant 0 : i32
    return %arg0, %arg1, %c0_i32, %c0_i32_0 : i32, i32, i32, i32
  }
  func.func @transform_1(%arg0: i32, %arg1: i32) -> (i32, i32, i32, i32) {
    %c8_i32 = arith.constant 8 : i32
    %0 = arith.muli %arg1, %c8_i32 : i32
    %c1_i32 = arith.constant 1 : i32
    %1 = arith.subi %0, %c1_i32 : i32
    %c0_i32 = arith.constant 0 : i32
    %2 = arith.maxsi %1, %c0_i32 : i32
    %c0_i32_0 = arith.constant 0 : i32
    %c0_i32_1 = arith.constant 0 : i32
    %c0_i32_2 = arith.constant 0 : i32
    return %arg0, %2, %c0_i32_0, %c0_i32_1 : i32, i32, i32, i32
  }
  func.func @transform_2(%arg0: i32, %arg1: i32) -> (i32, i32, i32, i32) {
    %c8_i32 = arith.constant 8 : i32
    %0 = arith.muli %arg1, %c8_i32 : i32
    %c8_i32_0 = arith.constant 8 : i32
    %1 = arith.addi %0, %c8_i32_0 : i32
    %c15_i32 = arith.constant 15 : i32
    %2 = arith.minsi %1, %c15_i32 : i32
    %c0_i32 = arith.constant 0 : i32
    %c0_i32_1 = arith.constant 0 : i32
    %c0_i32_2 = arith.constant 0 : i32
    return %arg0, %2, %c0_i32, %c0_i32_1 : i32, i32, i32, i32
  }
  func.func @transform_3(%arg0: i32, %arg1: i32) -> (i32, i32) {
    %c0_i32 = arith.constant 0 : i32
    %c0_i32_0 = arith.constant 0 : i32
    %c0_i32_1 = arith.constant 0 : i32
    return %c0_i32, %c0_i32_0 : i32, i32
  }
  func.func @transform_4(%arg0: i32, %arg1: i32) -> (i32, i32, i32, i32) {
    %c0_i32 = arith.constant 0 : i32
    %c0_i32_0 = arith.constant 0 : i32
    %c0_i32_1 = arith.constant 0 : i32
    return %arg0, %arg1, %c0_i32, %c0_i32_0 : i32, i32, i32, i32
  }
  func.func @transform_5(%arg0: i32, %arg1: i32) -> (i32, i32, i32, i32) {
    %c0_i32 = arith.constant 0 : i32
    %c0_i32_0 = arith.constant 0 : i32
    %c0_i32_1 = arith.constant 0 : i32
    return %arg0, %arg1, %c0_i32, %c0_i32_0 : i32, i32, i32, i32
  }
}

</mosaic_0001>

<llo_original>
// kernel: tpu_custom_call.1
$region0: #{tpu_custom_call.1}
  #allocation0 [shape = 'u32[]', space=smem, size = 0x4, offset = 0x4, fixed_abs, tag = 'smem constant byte address 0x4 - core index']
  #allocation1 [shape = 'u32[144,128]{1,0:T(1,128)}', space=vmem, size = 0x12000, scoped, tag = 'internal scratch']
  %s0 = inlined_call_operand.vmem [shape: f32[2,16,16,8], index: 0, kind: input, shape index: {}]
  %s1 = inlined_call_operand.vmem [shape: f32[2,16,16,8], index: 1, kind: input, shape index: {}]
  %s2 = inlined_call_operand.vmem [shape: f32[2,16,16,8], index: 2, kind: input, shape index: {}]
  %s3 = inlined_call_operand.vmem [shape: bf16[72,128], index: 3, kind: input, shape index: {}]
  %s4 = inlined_call_operand.hbm [shape: f32[2,16,16,128], index: 4, kind: output, shape index: {0}]
  %s5 = inlined_call_operand.hbm [shape: f32[2,2,2,128], index: 5, kind: output, shape index: {1}]
  %6 = xla_tuple %s4, %s5
  %s7 = sld [smem:[#allocation0]]
  $region57: #{tpu_custom_call.1} parent=0
    _
  %s9 = ssub.s32 1, %s7
  %s10 = scalar_select 0, %s9, %s7
  $region1: #{tpu_custom_call.1} parent=0
    #allocation2 [shape = 'u8[131072]{0}', space=vmem, size = 0x20000, scoped, tag = 'output window, operand 0']
    #allocation3 [shape = 's32[2]{0}', space=sflag, size = 0x8, scoped, tag = 'scoped memory for tpu_custom_call.1']
    #allocation4 [shape = 'u8[2048]{0}', space=vmem, size = 0x800, scoped, tag = 'output window, operand 1']
    #allocation5 [shape = 's32[2]{0}', space=sflag, size = 0x8, scoped, tag = 'scoped memory for tpu_custom_call.1']
    %11 = vsyncpa [#allocation3], 0
    %s12 = scalar_lea.sflag [#allocation3], 1
    %13 = vsyncpa %s12, 0
    %14 = vsyncpa [#allocation5], 0
    %s15 = scalar_lea.sflag [#allocation5], 1
    %16 = vsyncpa %s15, 0
    loop: start=0, step=1, limit=6
    $region2: #{tpu_custom_call.1} parent=1 // loop_pre_header
      _
    $region3: #{tpu_custom_call.1} parent=1 // loop_header
      %s18 = sphi 0, %s22
      %p19 = scmp.ge.s32.totalorder %s18, 6
      %s25 = sphi 0, %s37
      %s26 = sphi 0, %s33
      %s27 = sphi 0, %s25
      %s28 = sphi 0, %s26
      %s29 = sphi 0, %s27
      %s30 = sphi 0, %s28
      %s42 = sphi 0, %s44
      %s45 = sphi 0, %s42
      %s46 = sphi 0, %s45
      %s62 = sphi 0, %s46
      %s78 = sphi 0, %s80
      %s81 = sphi 0, %s78
      %s82 = sphi 0, %s81
      %s98 = sphi 0, %s82
      %s114 = sphi 0, %s116
      %s117 = sphi 0, %s114
      %s118 = sphi 0, %s117
      %s134 = sphi 0, %s118
      %s138 = sphi 0, %s138
      %s140 = sphi 0, %s138
      %s141 = sphi 0, %s140
      %s155 = sphi 0, %s141
      %s163 = sphi 0, %s165
      %s166 = sphi 0, %s163
      %s167 = sphi 0, %s166
      %s183 = sphi 0, %s167
      %s191 = sphi 0, %s193
      %s194 = sphi 0, %s191
      %s195 = sphi 0, %s194
      %s211 = sphi 0, %s195
    $region4: #{tpu_custom_call.1} parent=1 // loop_header_branch
      %21 = sbr.rel (%p19) target = $region8
    $region5: #{tpu_custom_call.1} parent=1 // loop_body
      %s23 = ssub.s32 %s18, 1
      %s24 = ssub.s32 %s18, 2
      %s31 = sadd.s32 1, %s26
      %p32 = scmp.ge.s32.totalorder %s31, 2
      %s33 = scalar_select %p32, 0, %s31
      %s34 = sadd.s32 1, %s25
      %s35 = scalar_select %p32, %s34, %s25
      %p36 = scmp.ge.s32.totalorder %s35, 2
      %s37 = scalar_select %p36, 0, %s35
      %s38 = ssub.s32 %s25, %s37
      %s39 = ssub.s32 %s26, %s33
      %s40 = sor.u32 %s38, %s39
      %p41 = scmp.eq.s32.totalorder %s40, 0
      %s43 = sadd.s32 %s42, 1
      %s44 = scalar_select %p41, %s42, %s43
      %p47 = pneg %p41
      %p48 = scmp.eq.s32.totalorder %s18, 3
      %p49 = por %p47, %p48
      %p50 = scmp.ne.s32.totalorder %s42, %s45
      %p51 = scmp.eq.s32.totalorder %s18, 0
      %p52 = por %p50, %p51
      %p53 = scmp.ne.s32.totalorder %s42, %s45
      %p54 = scmp.eq.s32.totalorder %s23, 3
      %p55 = por %p53, %p54
      %p56 = scmp.ne.s32.totalorder %s45, %s46
      %p57 = scmp.eq.s32.totalorder %s23, 0
      %p58 = por %p56, %p57
      %p59 = scmp.ne.s32.totalorder %s45, %s46
      %p60 = scmp.eq.s32.totalorder %s24, 3
      %p61 = por %p59, %p60
      %p63 = scmp.ne.s32.totalorder %s46, %s62
      %p64 = scmp.eq.s32.totalorder %s24, 0
      %p65 = por %p63, %p64
      %s66 = smul.u32 %s26, 8
      %s67 = ssub.s32 %s66, 1
      %p68 = scmp.gt.s32.totalorder %s67, 0
      %s69 = scalar_select %p68, %s67, 0
      %s70 = smul.u32 %s33, 8
      %s71 = ssub.s32 %s70, 1
      %p72 = scmp.gt.s32.totalorder %s71, 0
      %s73 = scalar_select %p72, %s71, 0
      %s74 = ssub.s32 %s25, %s37
      %s75 = ssub.s32 %s69, %s73
      %s76 = sor.u32 %s74, %s75
      %p77 = scmp.eq.s32.totalorder %s76, 0
      %s79 = sadd.s32 %s78, 1
      %s80 = scalar_select %p77, %s78, %s79
      %p83 = pneg %p77
      %p84 = scmp.eq.s32.totalorder %s18, 3
      %p85 = por %p83, %p84
      %p86 = scmp.ne.s32.totalorder %s78, %s81
      %p87 = scmp.eq.s32.totalorder %s18, 0
      %p88 = por %p86, %p87
      %p89 = scmp.ne.s32.totalorder %s78, %s81
      %p90 = scmp.eq.s32.totalorder %s23, 3
      %p91 = por %p89, %p90
      %p92 = scmp.ne.s32.totalorder %s81, %s82
      %p93 = scmp.eq.s32.totalorder %s23, 0
      %p94 = por %p92, %p93
      %p95 = scmp.ne.s32.totalorder %s81, %s82
      %p96 = scmp.eq.s32.totalorder %s24, 3
      %p97 = por %p95, %p96
      %p99 = scmp.ne.s32.totalorder %s82, %s98
      %p100 = scmp.eq.s32.totalorder %s24, 0
      %p101 = por %p99, %p100
      %s102 = smul.u32 %s26, 8
      %s103 = sadd.s32 %s102, 8
      %p104 = scmp.lt.s32.totalorder %s103, 15
      %s105 = scalar_select %p104, %s103, 15
      %s106 = smul.u32 %s33, 8
      %s107 = sadd.s32 %s106, 8
      %p108 = scmp.lt.s32.totalorder %s107, 15
      %s109 = scalar_select %p108, %s107, 15
      %s110 = ssub.s32 %s25, %s37
      %s111 = ssub.s32 %s105, %s109
      %s112 = sor.u32 %s110, %s111
      %p113 = scmp.eq.s32.totalorder %s112, 0
      %s115 = sadd.s32 %s114, 1
      %s116 = scalar_select %p113, %s114, %s115
      %p119 = pneg %p113
      %p120 = scmp.eq.s32.totalorder %s18, 3
      %p121 = por %p119, %p120
      %p122 = scmp.ne.s32.totalorder %s114, %s117
      %p123 = scmp.eq.s32.totalorder %s18, 0
      %p124 = por %p122, %p123
      %p125 = scmp.ne.s32.totalorder %s114, %s117
      %p126 = scmp.eq.s32.totalorder %s23, 3
      %p127 = por %p125, %p126
      %p128 = scmp.ne.s32.totalorder %s117, %s118
      %p129 = scmp.eq.s32.totalorder %s23, 0
      %p130 = por %p128, %p129
      %p131 = scmp.ne.s32.totalorder %s117, %s118
      %p132 = scmp.eq.s32.totalorder %s24, 3
      %p133 = por %p131, %p132
      %p135 = scmp.ne.s32.totalorder %s118, %s134
      %p136 = scmp.eq.s32.totalorder %s24, 0
      %p137 = por %p135, %p136
      %s139 = sadd.s32 %s138, 1
      %p142 = scmp.eq.s32.totalorder %s18, 3
      %p143 = scmp.ne.s32.totalorder %s138, %s140
      %p144 = scmp.eq.s32.totalorder %s18, 0
      %p145 = por %p143, %p144
      %p146 = scmp.ne.s32.totalorder %s138, %s140
      %p147 = scmp.eq.s32.totalorder %s23, 3
      %p148 = por %p146, %p147
      %p149 = scmp.ne.s32.totalorder %s140, %s141
      %p150 = scmp.eq.s32.totalorder %s23, 0
      %p151 = por %p149, %p150
      %p152 = scmp.ne.s32.totalorder %s140, %s141
      %p153 = scmp.eq.s32.totalorder %s24, 3
      %p154 = por %p152, %p153
      %p156 = scmp.ne.s32.totalorder %s141, %s155
      %p157 = scmp.eq.s32.totalorder %s24, 0
      %p158 = por %p156, %p157
      %s159 = ssub.s32 %s25, %s37
      %s160 = ssub.s32 %s26, %s33
      %s161 = sor.u32 %s159, %s160
      %p162 = scmp.eq.s32.totalorder %s161, 0
      %s164 = sadd.s32 %s163, 1
      %s165 = scalar_select %p162, %s163, %s164
      %p168 = pneg %p162
      %p169 = scmp.eq.s32.totalorder %s18, 3
      %p170 = por %p168, %p169
      %p171 = scmp.ne.s32.totalorder %s163, %s166
      %p172 = scmp.eq.s32.totalorder %s18, 0
      %p173 = por %p171, %p172
      %p174 = scmp.ne.s32.totalorder %s163, %s166
      %p175 = scmp.eq.s32.totalorder %s23, 3
      %p176 = por %p174, %p175
      %p177 = scmp.ne.s32.totalorder %s166, %s167
      %p178 = scmp.eq.s32.totalorder %s23, 0
      %p179 = por %p177, %p178
      %p180 = scmp.ne.s32.totalorder %s166, %s167
      %p181 = scmp.eq.s32.totalorder %s24, 3
      %p182 = por %p180, %p181
      %p184 = scmp.ne.s32.totalorder %s167, %s183
      %p185 = scmp.eq.s32.totalorder %s24, 0
      %p186 = por %p184, %p185
      %s187 = ssub.s32 %s25, %s37
      %s188 = ssub.s32 %s26, %s33
      %s189 = sor.u32 %s187, %s188
      %p190 = scmp.eq.s32.totalorder %s189, 0
      %s192 = sadd.s32 %s191, 1
      %s193 = scalar_select %p190, %s191, %s192
      %p196 = pneg %p190
      %p197 = scmp.eq.s32.totalorder %s18, 3
      %p198 = por %p196, %p197
      %p199 = scmp.ne.s32.totalorder %s191, %s194
      %p200 = scmp.eq.s32.totalorder %s18, 0
      %p201 = por %p199, %p200
      %p202 = scmp.ne.s32.totalorder %s191, %s194
      %p203 = scmp.eq.s32.totalorder %s23, 3
      %p204 = por %p202, %p203
      %p205 = scmp.ne.s32.totalorder %s194, %s195
      %p206 = scmp.eq.s32.totalorder %s23, 0
      %p207 = por %p205, %p206
      %p208 = scmp.ne.s32.totalorder %s194, %s195
      %p209 = scmp.eq.s32.totalorder %s24, 3
      %p210 = por %p208, %p209
      %p212 = scmp.ne.s32.totalorder %s195, %s211
      %p213 = scmp.eq.s32.totalorder %s24, 0
      %p214 = por %p212, %p213
      %p215 = scmp.le.s32.totalorder 1, %s18
      %p216 = scmp.lt.s32.totalorder %s18, 5
      %p217 = pnand %p215, %p216
      %p218 = pneg %p217
      // Predicated region
      $region9: #{tpu_custom_call.1} parent=5 // pred_check
        _
      $region10: #{tpu_custom_call.1} parent=5 // pred_check_branch
        %220 = sbr.rel (%p217) target = $region12
      $region11: #{tpu_custom_call.1} parent=5 // pred_region
        %s221 = ssub.s32 %s18, 1
        // Predicated region
        $region13: #{tpu_custom_call.1} parent=11 // pred_check
          %p222 = pneg %p151
        $region14: #{tpu_custom_call.1} parent=11 // pred_check_branch
          %224 = sbr.rel (%p222) target = $region16
        $region15: #{tpu_custom_call.1} parent=11 // pred_region
          _
        $region16: #{tpu_custom_call.1} parent=11 // pred_fallthru
          _
      $region12: #{tpu_custom_call.1} parent=5 // pred_fallthru
        _
      %p225 = scmp.lt.s32.totalorder %s18, 4
      // Predicated region
      $region17: #{tpu_custom_call.1} parent=5 // pred_check
        %p226 = pneg %p225
      $region18: #{tpu_custom_call.1} parent=5 // pred_check_branch
        %228 = sbr.rel (%p226) target = $region20
      $region19: #{tpu_custom_call.1} parent=5 // pred_region
        // Predicated region
        $region21: #{tpu_custom_call.1} parent=19 // pred_check
          %p229 = pneg %p52
        $region22: #{tpu_custom_call.1} parent=19 // pred_check_branch
          %231 = sbr.rel (%p229) target = $region24
        $region23: #{tpu_custom_call.1} parent=19 // pred_region
          %s232 = smul.u32 8, %s26
          %p233 = scmp.lt.s32.totalorder %s25, 1
          %s234 = scalar_select %p233, %s25, 1
          %p235 = scmp.lt.s32.totalorder %s232, 15
          %s236 = scalar_select %p235, %s232, 15
          %s237 = smul.addr %s236, 2
          %s238 = smul.addr %s234, 32
          %s239 = sadd.s32 %s237, %s238
          %s240 = smul.addr %s239, 8
          %s241 = scalar_lea.vmem %s0, %s240
          %s242 = smul.u32 8, %s26
        $region24: #{tpu_custom_call.1} parent=19 // pred_fallthru
          _
        // Predicated region
        $region25: #{tpu_custom_call.1} parent=19 // pred_check
          %p243 = pneg %p88
        $region26: #{tpu_custom_call.1} parent=19 // pred_check_branch
          %245 = sbr.rel (%p243) target = $region28
        $region27: #{tpu_custom_call.1} parent=19 // pred_region
          %s246 = smul.u32 %s26, 8
          %s247 = ssub.s32 %s246, 1
          %p248 = scmp.gt.s32.totalorder %s247, 0
          %s249 = scalar_select %p248, %s247, 0
          %p250 = scmp.lt.s32.totalorder %s25, 1
          %s251 = scalar_select %p250, %s25, 1
          %p252 = scmp.lt.s32.totalorder %s249, 15
          %s253 = scalar_select %p252, %s249, 15
          %s254 = smul.addr %s253, 2
          %s255 = smul.addr %s251, 32
          %s256 = sadd.s32 %s254, %s255
          %s257 = smul.addr %s256, 8
          %s258 = scalar_lea.vmem %s1, %s257
          %s259 = smul.u32 %s26, 8
          %s260 = ssub.s32 %s259, 1
          %p261 = scmp.gt.s32.totalorder %s260, 0
          %s262 = scalar_select %p261, %s260, 0
        $region28: #{tpu_custom_call.1} parent=19 // pred_fallthru
          _
        // Predicated region
        $region29: #{tpu_custom_call.1} parent=19 // pred_check
          %p263 = pneg %p124
        $region30: #{tpu_custom_call.1} parent=19 // pred_check_branch
          %265 = sbr.rel (%p263) target = $region32
        $region31: #{tpu_custom_call.1} parent=19 // pred_region
          %s266 = smul.u32 %s26, 8
          %s267 = sadd.s32 %s266, 8
          %p268 = scmp.lt.s32.totalorder %s267, 15
          %s269 = scalar_select %p268, %s267, 15
          %p270 = scmp.lt.s32.totalorder %s25, 1
          %s271 = scalar_select %p270, %s25, 1
          %p272 = scmp.lt.s32.totalorder %s269, 15
          %s273 = scalar_select %p272, %s269, 15
          %s274 = smul.addr %s273, 2
          %s275 = smul.addr %s271, 32
          %s276 = sadd.s32 %s274, %s275
          %s277 = smul.addr %s276, 8
          %s278 = scalar_lea.vmem %s2, %s277
          %s279 = smul.u32 %s26, 8
          %s280 = sadd.s32 %s279, 8
          %p281 = scmp.lt.s32.totalorder %s280, 15
          %s282 = scalar_select %p281, %s280, 15
        $region32: #{tpu_custom_call.1} parent=19 // pred_fallthru
          _
      $region20: #{tpu_custom_call.1} parent=5 // pred_fallthru
        _
      %p283 = scmp.le.s32.totalorder 1, %s18
      %p284 = scmp.lt.s32.totalorder %s18, 5
      %p285 = pnand %p283, %p284
      %p286 = pneg %p285
      // Predicated region
      $region33: #{tpu_custom_call.1} parent=5 // pred_check
        _
      $region34: #{tpu_custom_call.1} parent=5 // pred_check_branch
        %288 = sbr.rel (%p285) target = $region36
      $region35: #{tpu_custom_call.1} parent=5 // pred_region
        %s289 = ssub.s32 %s18, 1
        %s290 = smul.u32 8, %s28
        %p291 = scmp.lt.s32.totalorder %s27, 1
        %s292 = scalar_select %p291, %s27, 1
        %p293 = scmp.lt.s32.totalorder %s290, 15
        %s294 = scalar_select %p293, %s290, 15
        %s295 = smul.addr %s294, 2
        %s296 = smul.addr %s292, 32
        %s297 = sadd.s32 %s295, %s296
        %s298 = smul.addr %s297, 8
        %s299 = scalar_lea.vmem %s0, %s298
        %p300 = pneg %p58
        %p301 = pneg %p55
        %s302 = smul.u32 %s28, 8
        %s303 = ssub.s32 %s302, 1
        %p304 = scmp.gt.s32.totalorder %s303, 0
        %s305 = scalar_select %p304, %s303, 0
        %p306 = scmp.lt.s32.totalorder %s27, 1
        %s307 = scalar_select %p306, %s27, 1
        %p308 = scmp.lt.s32.totalorder %s305, 15
        %s309 = scalar_select %p308, %s305, 15
        %s310 = smul.addr %s309, 2
        %s311 = smul.addr %s307, 32
        %s312 = sadd.s32 %s310, %s311
        %s313 = smul.addr %s312, 8
        %s314 = scalar_lea.vmem %s1, %s313
        %p315 = pneg %p94
        %p316 = pneg %p91
        %s317 = smul.u32 %s28, 8
        %s318 = sadd.s32 %s317, 8
        %p319 = scmp.lt.s32.totalorder %s318, 15
        %s320 = scalar_select %p319, %s318, 15
        %p321 = scmp.lt.s32.totalorder %s27, 1
        %s322 = scalar_select %p321, %s27, 1
        %p323 = scmp.lt.s32.totalorder %s320, 15
        %s324 = scalar_select %p323, %s320, 15
        %s325 = smul.addr %s324, 2
        %s326 = smul.addr %s322, 32
        %s327 = sadd.s32 %s325, %s326
        %s328 = smul.addr %s327, 8
        %s329 = scalar_lea.vmem %s2, %s328
        %p330 = pneg %p130
        %p331 = pneg %p127
        %p332 = pneg %p151
        %p333 = pneg %p148
        %p334 = pneg %p179
        %p335 = pneg %p176
        %s336 = sand.u32 %s166, 1
        %s337 = scalar_lea.sflag [#allocation3], %s336
        %s338 = sand.u32 %s166, 1
        %s339 = smul.addr %s338, 128
        %s340 = scalar_lea.vmem [#allocation2], %s339
        %p341 = pneg %p207
        %p342 = pneg %p204
        %s343 = sand.u32 %s194, 1
        %s344 = scalar_lea.sflag [#allocation5], %s343
        %s345 = sand.u32 %s194, 1
        %s346 = smul.addr %s345, 2
        %s347 = scalar_lea.vmem [#allocation4], %s346
        %s348 = smul.u32 8, %s28
        %p349 = scmp.lt.s32.totalorder %s27, 1
        %s350 = scalar_select %p349, %s27, 1
        %p351 = scmp.lt.s32.totalorder %s348, 15
        %s352 = scalar_select %p351, %s348, 15
        %s353 = smul.addr %s352, 2
        %s354 = smul.addr %s350, 32
        %s355 = sadd.s32 %s353, %s354
        %s356 = smul.addr %s355, 8
        %s357 = scalar_lea.vmem %s0, %s356
        %s358 = smul.u32 8, %s28
        %s359 = smul.u32 %s28, 8
        %s360 = ssub.s32 %s359, 1
        %p361 = scmp.gt.s32.totalorder %s360, 0
        %s362 = scalar_select %p361, %s360, 0
        %p363 = scmp.lt.s32.totalorder %s27, 1
        %s364 = scalar_select %p363, %s27, 1
        %p365 = scmp.lt.s32.totalorder %s362, 15
        %s366 = scalar_select %p365, %s362, 15
        %s367 = smul.addr %s366, 2
        %s368 = smul.addr %s364, 32
        %s369 = sadd.s32 %s367, %s368
        %s370 = smul.addr %s369, 8
        %s371 = scalar_lea.vmem %s1, %s370
        %s372 = smul.u32 %s28, 8
        %s373 = ssub.s32 %s372, 1
        %p374 = scmp.gt.s32.totalorder %s373, 0
        %s375 = scalar_select %p374, %s373, 0
        %s376 = smul.u32 %s28, 8
        %s377 = sadd.s32 %s376, 8
        %p378 = scmp.lt.s32.totalorder %s377, 15
        %s379 = scalar_select %p378, %s377, 15
        %p380 = scmp.lt.s32.totalorder %s27, 1
        %s381 = scalar_select %p380, %s27, 1
        %p382 = scmp.lt.s32.totalorder %s379, 15
        %s383 = scalar_select %p382, %s379, 15
        %s384 = smul.addr %s383, 2
        %s385 = smul.addr %s381, 32
        %s386 = sadd.s32 %s384, %s385
        %s387 = smul.addr %s386, 8
        %s388 = scalar_lea.vmem %s2, %s387
        %s389 = smul.u32 %s28, 8
        %s390 = sadd.s32 %s389, 8
        %p391 = scmp.lt.s32.totalorder %s390, 15
        %s392 = scalar_select %p391, %s390, 15
        %s393 = smul.u32 8, %s28
        %v395 = vld [vmem:[%s357] sm:$0xff]
        %v396 = vld [vmem:[%s357 + $0x8] sm:$0xff]
        %v397 = vld [vmem:[%s357 + $0x10] sm:$0xff]
        %v398 = vld [vmem:[%s357 + $0x18] sm:$0xff]
        %v399 = vld [vmem:[%s357 + $0x20] sm:$0xff]
        %v400 = vld [vmem:[%s357 + $0x28] sm:$0xff]
        %v401 = vld [vmem:[%s357 + $0x30] sm:$0xff]
        %v402 = vld [vmem:[%s357 + $0x38] sm:$0xff]
        %v403 = vld [vmem:[%s357 + $0x40] sm:$0xff]
        %v404 = vld [vmem:[%s357 + $0x48] sm:$0xff]
        %v405 = vld [vmem:[%s357 + $0x50] sm:$0xff]
        %v406 = vld [vmem:[%s357 + $0x58] sm:$0xff]
        %v407 = vld [vmem:[%s357 + $0x60] sm:$0xff]
        %v408 = vld [vmem:[%s357 + $0x68] sm:$0xff]
        %v409 = vld [vmem:[%s357 + $0x70] sm:$0xff]
        %v410 = vld [vmem:[%s357 + $0x78] sm:$0xff]
        %v411 = vld [vmem:[%s371] sm:$0xff]
        %v412 = vld [vmem:[%s371 + $0x8] sm:$0xff]
        %v413 = vld [vmem:[%s388] sm:$0xff]
        %v414 = vld [vmem:[%s388 + $0x8] sm:$0xff]
        %p415 = scmp.gt.s32.totalorder %s28, 0
        %s416 = scalar_select %p415, 1, 0
        %s417 = scvt.s32.f32 %s416
        %v418 = vstv %s417
        %v419 = vmul.f32 %v411, %v418
        %v420 = vmul.f32 %v412, %v418
        %p421 = scmp.lt.s32.totalorder %s28, 1
        %s422 = scalar_select %p421, 1, 0
        %s423 = scvt.s32.f32 %s422
        %v424 = vstv %s423
        %v425 = vmul.f32 %v413, %v424
        %v426 = vmul.f32 %v414, %v424
        %vm447 = vcmask 1040384
        %v448 = vrot.slane %v419, 7
        %v449 = vrot.slane %v420, 7
        %v450 = vsel %vm447, %v448, %v449
        %v451 = vrot.slane %v395, 7
        %v452 = vrot.slane %v396, 7
        %v453 = vsel %vm447, %v451, %v452
        %v454 = vrot.slane %v397, 7
        %v455 = vrot.slane %v398, 7
        %v456 = vsel %vm447, %v454, %v455
        %v457 = vrot.slane %v399, 7
        %v458 = vrot.slane %v400, 7
        %v459 = vsel %vm447, %v457, %v458
        %v460 = vrot.slane %v401, 7
        %v461 = vrot.slane %v402, 7
        %v462 = vsel %vm447, %v460, %v461
        %v463 = vrot.slane %v403, 7
        %v464 = vrot.slane %v404, 7
        %v465 = vsel %vm447, %v463, %v464
        %v466 = vrot.slane %v405, 7
        %v467 = vrot.slane %v406, 7
        %v468 = vsel %vm447, %v466, %v467
        %v469 = vrot.slane %v407, 7
        %v470 = vrot.slane %v408, 7
        %v471 = vsel %vm447, %v469, %v470
        %v472 = vrot.slane %v409, 7
        %v473 = vrot.slane %v410, 7
        %v474 = vsel %vm447, %v472, %v473
        %v475 = vrot.slane %v425, 7
        %v476 = vrot.slane %v426, 7
        %v477 = vsel %vm447, %v475, %v476
        %v506 = vsel %vm447, 0.0, %v448
        %v507 = vsel %vm447, 0.0, %v451
        %v508 = vsel %vm447, 0.0, %v454
        %v509 = vsel %vm447, 0.0, %v457
        %v510 = vsel %vm447, 0.0, %v460
        %v511 = vsel %vm447, 0.0, %v463
        %v512 = vsel %vm447, 0.0, %v466
        %v513 = vsel %vm447, 0.0, %v469
        %v514 = vsel %vm447, 0.0, %v472
        %v515 = vsel %vm447, 0.0, %v475
        %v516 = vsel %vm447, %v449, 0.0
        %v517 = vsel %vm447, %v452, 0.0
        %v518 = vsel %vm447, %v455, 0.0
        %v519 = vsel %vm447, %v458, 0.0
        %v520 = vsel %vm447, %v461, 0.0
        %v521 = vsel %vm447, %v464, 0.0
        %v522 = vsel %vm447, %v467, 0.0
        %v523 = vsel %vm447, %v470, 0.0
        %v524 = vsel %vm447, %v473, 0.0
        %v525 = vsel %vm447, %v476, 0.0
        %vm542 = vcmask 1046528
        %v543 = vrot.slane %v506, 1
        %v544 = vrot.slane %v450, 1
        %v545 = vsel %vm542, %v543, %v544
        %v546 = vrot.slane %v516, 1
        %v547 = vsel %vm542, %v544, %v546
        %v548 = vrot.slane %v507, 1
        %v549 = vrot.slane %v453, 1
        %v550 = vsel %vm542, %v548, %v549
        %v551 = vrot.slane %v517, 1
        %v552 = vsel %vm542, %v549, %v551
        %v553 = vrot.slane %v508, 1
        %v554 = vrot.slane %v456, 1
        %v555 = vsel %vm542, %v553, %v554
        %v556 = vrot.slane %v518, 1
        %v557 = vsel %vm542, %v554, %v556
        %v558 = vrot.slane %v509, 1
        %v559 = vrot.slane %v459, 1
        %v560 = vsel %vm542, %v558, %v559
        %v561 = vrot.slane %v519, 1
        %v562 = vsel %vm542, %v559, %v561
        %v563 = vrot.slane %v510, 1
        %v564 = vrot.slane %v462, 1
        %v565 = vsel %vm542, %v563, %v564
        %v566 = vrot.slane %v520, 1
        %v567 = vsel %vm542, %v564, %v566
        %v568 = vrot.slane %v511, 1
        %v569 = vrot.slane %v465, 1
        %v570 = vsel %vm542, %v568, %v569
        %v571 = vrot.slane %v521, 1
        %v572 = vsel %vm542, %v569, %v571
        %v573 = vrot.slane %v512, 1
        %v574 = vrot.slane %v468, 1
        %v575 = vsel %vm542, %v573, %v574
        %v576 = vrot.slane %v522, 1
        %v577 = vsel %vm542, %v574, %v576
        %v578 = vrot.slane %v513, 1
        %v579 = vrot.slane %v471, 1
        %v580 = vsel %vm542, %v578, %v579
        %v581 = vrot.slane %v523, 1
        %v582 = vsel %vm542, %v579, %v581
        %vm583 = vcmask 1045504
        %v584 = vrot.slane %v506, 2
        %v585 = vrot.slane %v450, 2
        %v586 = vsel %vm583, %v584, %v585
        %v587 = vrot.slane %v516, 2
        %v588 = vsel %vm583, %v585, %v587
        %v589 = vrot.slane %v507, 2
        %v590 = vrot.slane %v453, 2
        %v591 = vsel %vm583, %v589, %v590
        %v592 = vrot.slane %v517, 2
        %v593 = vsel %vm583, %v590, %v592
        %v594 = vrot.slane %v508, 2
        %v595 = vrot.slane %v456, 2
        %v596 = vsel %vm583, %v594, %v595
        %v597 = vrot.slane %v518, 2
        %v598 = vsel %vm583, %v595, %v597
        %v599 = vrot.slane %v509, 2
        %v600 = vrot.slane %v459, 2
        %v601 = vsel %vm583, %v599, %v600
        %v602 = vrot.slane %v519, 2
        %v603 = vsel %vm583, %v600, %v602
        %v604 = vrot.slane %v510, 2
        %v605 = vrot.slane %v462, 2
        %v606 = vsel %vm583, %v604, %v605
        %v607 = vrot.slane %v520, 2
        %v608 = vsel %vm583, %v605, %v607
        %v609 = vrot.slane %v511, 2
        %v610 = vrot.slane %v465, 2
        %v611 = vsel %vm583, %v609, %v610
        %v612 = vrot.slane %v521, 2
        %v613 = vsel %vm583, %v610, %v612
        %v614 = vrot.slane %v512, 2
        %v615 = vrot.slane %v468, 2
        %v616 = vsel %vm583, %v614, %v615
        %v617 = vrot.slane %v522, 2
        %v618 = vsel %vm583, %v615, %v617
        %v619 = vrot.slane %v513, 2
        %v620 = vrot.slane %v471, 2
        %v621 = vsel %vm583, %v619, %v620
        %v622 = vrot.slane %v523, 2
        %v623 = vsel %vm583, %v620, %v622
        %v626 = vrot.slane %v514, 1
        %v627 = vrot.slane %v474, 1
        %v628 = vsel %vm542, %v626, %v627
        %v629 = vrot.slane %v524, 1
        %v630 = vsel %vm542, %v627, %v629
        %v631 = vrot.slane %v514, 2
        %v632 = vrot.slane %v474, 2
        %v633 = vsel %vm583, %v631, %v632
        %v634 = vrot.slane %v524, 2
        %v635 = vsel %vm583, %v632, %v634
        %v638 = vrot.slane %v515, 1
        %v639 = vrot.slane %v477, 1
        %v640 = vsel %vm542, %v638, %v639
        %v641 = vrot.slane %v525, 1
        %v642 = vsel %vm542, %v639, %v641
        %v643 = vrot.slane %v515, 2
        %v644 = vrot.slane %v477, 2
        %v645 = vsel %vm583, %v643, %v644
        %v646 = vrot.slane %v525, 2
        %v647 = vsel %vm583, %v644, %v646
        %648 = vrot.lane.b32.xlu0 %v545, 8
        %v649 = vpop.permute.xlu0 %648
        %650 = vrot.lane.b32.xlu0 %v547, 8
        %v651 = vpop.permute.xlu0 %650
        %652 = vrot.lane.b32.xlu0 %v550, 8
        %v653 = vpop.permute.xlu0 %652
        %654 = vrot.lane.b32.xlu0 %v552, 8
        %v655 = vpop.permute.xlu0 %654
        %656 = vrot.lane.b32.xlu0 %v555, 8
        %v657 = vpop.permute.xlu0 %656
        %658 = vrot.lane.b32.xlu0 %v557, 8
        %v659 = vpop.permute.xlu0 %658
        %660 = vrot.lane.b32.xlu0 %v560, 8
        %v661 = vpop.permute.xlu0 %660
        %662 = vrot.lane.b32.xlu0 %v562, 8
        %v663 = vpop.permute.xlu0 %662
        %664 = vrot.lane.b32.xlu0 %v565, 8
        %v665 = vpop.permute.xlu0 %664
        %666 = vrot.lane.b32.xlu0 %v567, 8
        %v667 = vpop.permute.xlu0 %666
        %668 = vrot.lane.b32.xlu0 %v570, 8
        %v669 = vpop.permute.xlu0 %668
        %670 = vrot.lane.b32.xlu0 %v572, 8
        %v671 = vpop.permute.xlu0 %670
        %672 = vrot.lane.b32.xlu0 %v575, 8
        %v673 = vpop.permute.xlu0 %672
        %674 = vrot.lane.b32.xlu0 %v577, 8
        %v675 = vpop.permute.xlu0 %674
        %676 = vrot.lane.b32.xlu0 %v580, 8
        %v677 = vpop.permute.xlu0 %676
        %678 = vrot.lane.b32.xlu0 %v582, 8
        %v679 = vpop.permute.xlu0 %678
        %696 = vrot.lane.b32.xlu0 %v586, 16
        %v697 = vpop.permute.xlu0 %696
        %698 = vrot.lane.b32.xlu0 %v588, 16
        %v699 = vpop.permute.xlu0 %698
        %700 = vrot.lane.b32.xlu0 %v591, 16
        %v701 = vpop.permute.xlu0 %700
        %702 = vrot.lane.b32.xlu0 %v593, 16
        %v703 = vpop.permute.xlu0 %702
        %704 = vrot.lane.b32.xlu0 %v596, 16
        %v705 = vpop.permute.xlu0 %704
        %706 = vrot.lane.b32.xlu0 %v598, 16
        %v707 = vpop.permute.xlu0 %706
        %708 = vrot.lane.b32.xlu0 %v601, 16
        %v709 = vpop.permute.xlu0 %708
        %710 = vrot.lane.b32.xlu0 %v603, 16
        %v711 = vpop.permute.xlu0 %710
        %712 = vrot.lane.b32.xlu0 %v606, 16
        %v713 = vpop.permute.xlu0 %712
        %714 = vrot.lane.b32.xlu0 %v608, 16
        %v715 = vpop.permute.xlu0 %714
        %716 = vrot.lane.b32.xlu0 %v611, 16
        %v717 = vpop.permute.xlu0 %716
        %718 = vrot.lane.b32.xlu0 %v613, 16
        %v719 = vpop.permute.xlu0 %718
        %720 = vrot.lane.b32.xlu0 %v616, 16
        %v721 = vpop.permute.xlu0 %720
        %722 = vrot.lane.b32.xlu0 %v618, 16
        %v723 = vpop.permute.xlu0 %722
        %724 = vrot.lane.b32.xlu0 %v621, 16
        %v725 = vpop.permute.xlu0 %724
        %726 = vrot.lane.b32.xlu0 %v623, 16
        %v727 = vpop.permute.xlu0 %726
        %744 = vrot.lane.b32.xlu0 %v507, 24
        %v745 = vpop.permute.xlu0 %744
        %746 = vrot.lane.b32.xlu0 %v453, 24
        %v747 = vpop.permute.xlu0 %746
        %748 = vrot.lane.b32.xlu0 %v508, 24
        %v749 = vpop.permute.xlu0 %748
        %750 = vrot.lane.b32.xlu0 %v456, 24
        %v751 = vpop.permute.xlu0 %750
        %752 = vrot.lane.b32.xlu0 %v509, 24
        %v753 = vpop.permute.xlu0 %752
        %754 = vrot.lane.b32.xlu0 %v459, 24
        %v755 = vpop.permute.xlu0 %754
        %756 = vrot.lane.b32.xlu0 %v510, 24
        %v757 = vpop.permute.xlu0 %756
        %758 = vrot.lane.b32.xlu0 %v462, 24
        %v759 = vpop.permute.xlu0 %758
        %760 = vrot.lane.b32.xlu0 %v511, 24
        %v761 = vpop.permute.xlu0 %760
        %762 = vrot.lane.b32.xlu0 %v465, 24
        %v763 = vpop.permute.xlu0 %762
        %764 = vrot.lane.b32.xlu0 %v512, 24
        %v765 = vpop.permute.xlu0 %764
        %766 = vrot.lane.b32.xlu0 %v468, 24
        %v767 = vpop.permute.xlu0 %766
        %768 = vrot.lane.b32.xlu0 %v513, 24
        %v769 = vpop.permute.xlu0 %768
        %770 = vrot.lane.b32.xlu0 %v471, 24
        %v771 = vpop.permute.xlu0 %770
        %772 = vrot.lane.b32.xlu0 %v514, 24
        %v773 = vpop.permute.xlu0 %772
        %774 = vrot.lane.b32.xlu0 %v474, 24
        %v775 = vpop.permute.xlu0 %774
        %792 = vrot.lane.b32.xlu0 %v550, 32
        %v793 = vpop.permute.xlu0 %792
        %794 = vrot.lane.b32.xlu0 %v552, 32
        %v795 = vpop.permute.xlu0 %794
        %796 = vrot.lane.b32.xlu0 %v555, 32
        %v797 = vpop.permute.xlu0 %796
        %798 = vrot.lane.b32.xlu0 %v557, 32
        %v799 = vpop.permute.xlu0 %798
        %800 = vrot.lane.b32.xlu0 %v560, 32
        %v801 = vpop.permute.xlu0 %800
        %802 = vrot.lane.b32.xlu0 %v562, 32
        %v803 = vpop.permute.xlu0 %802
        %804 = vrot.lane.b32.xlu0 %v565, 32
        %v805 = vpop.permute.xlu0 %804
        %806 = vrot.lane.b32.xlu0 %v567, 32
        %v807 = vpop.permute.xlu0 %806
        %808 = vrot.lane.b32.xlu0 %v570, 32
        %v809 = vpop.permute.xlu0 %808
        %810 = vrot.lane.b32.xlu0 %v572, 32
        %v811 = vpop.permute.xlu0 %810
        %812 = vrot.lane.b32.xlu0 %v575, 32
        %v813 = vpop.permute.xlu0 %812
        %814 = vrot.lane.b32.xlu0 %v577, 32
        %v815 = vpop.permute.xlu0 %814
        %816 = vrot.lane.b32.xlu0 %v580, 32
        %v817 = vpop.permute.xlu0 %816
        %818 = vrot.lane.b32.xlu0 %v582, 32
        %v819 = vpop.permute.xlu0 %818
        %820 = vrot.lane.b32.xlu0 %v628, 32
        %v821 = vpop.permute.xlu0 %820
        %822 = vrot.lane.b32.xlu0 %v630, 32
        %v823 = vpop.permute.xlu0 %822
        %840 = vrot.lane.b32.xlu0 %v591, 40
        %v841 = vpop.permute.xlu0 %840
        %842 = vrot.lane.b32.xlu0 %v593, 40
        %v843 = vpop.permute.xlu0 %842
        %844 = vrot.lane.b32.xlu0 %v596, 40
        %v845 = vpop.permute.xlu0 %844
        %846 = vrot.lane.b32.xlu0 %v598, 40
        %v847 = vpop.permute.xlu0 %846
        %848 = vrot.lane.b32.xlu0 %v601, 40
        %v849 = vpop.permute.xlu0 %848
        %850 = vrot.lane.b32.xlu0 %v603, 40
        %v851 = vpop.permute.xlu0 %850
        %852 = vrot.lane.b32.xlu0 %v606, 40
        %v853 = vpop.permute.xlu0 %852
        %854 = vrot.lane.b32.xlu0 %v608, 40
        %v855 = vpop.permute.xlu0 %854
        %856 = vrot.lane.b32.xlu0 %v611, 40
        %v857 = vpop.permute.xlu0 %856
        %858 = vrot.lane.b32.xlu0 %v613, 40
        %v859 = vpop.permute.xlu0 %858
        %860 = vrot.lane.b32.xlu0 %v616, 40
        %v861 = vpop.permute.xlu0 %860
        %862 = vrot.lane.b32.xlu0 %v618, 40
        %v863 = vpop.permute.xlu0 %862
        %864 = vrot.lane.b32.xlu0 %v621, 40
        %v865 = vpop.permute.xlu0 %864
        %866 = vrot.lane.b32.xlu0 %v623, 40
        %v867 = vpop.permute.xlu0 %866
        %868 = vrot.lane.b32.xlu0 %v633, 40
        %v869 = vpop.permute.xlu0 %868
        %870 = vrot.lane.b32.xlu0 %v635, 40
        %v871 = vpop.permute.xlu0 %870
        %888 = vrot.lane.b32.xlu0 %v508, 48
        %v889 = vpop.permute.xlu0 %888
        %890 = vrot.lane.b32.xlu0 %v456, 48
        %v891 = vpop.permute.xlu0 %890
        %892 = vrot.lane.b32.xlu0 %v509, 48
        %v893 = vpop.permute.xlu0 %892
        %894 = vrot.lane.b32.xlu0 %v459, 48
        %v895 = vpop.permute.xlu0 %894
        %896 = vrot.lane.b32.xlu0 %v510, 48
        %v897 = vpop.permute.xlu0 %896
        %898 = vrot.lane.b32.xlu0 %v462, 48
        %v899 = vpop.permute.xlu0 %898
        %900 = vrot.lane.b32.xlu0 %v511, 48
        %v901 = vpop.permute.xlu0 %900
        %902 = vrot.lane.b32.xlu0 %v465, 48
        %v903 = vpop.permute.xlu0 %902
        %904 = vrot.lane.b32.xlu0 %v512, 48
        %v905 = vpop.permute.xlu0 %904
        %906 = vrot.lane.b32.xlu0 %v468, 48
        %v907 = vpop.permute.xlu0 %906
        %908 = vrot.lane.b32.xlu0 %v513, 48
        %v909 = vpop.permute.xlu0 %908
        %910 = vrot.lane.b32.xlu0 %v471, 48
        %v911 = vpop.permute.xlu0 %910
        %912 = vrot.lane.b32.xlu0 %v514, 48
        %v913 = vpop.permute.xlu0 %912
        %914 = vrot.lane.b32.xlu0 %v474, 48
        %v915 = vpop.permute.xlu0 %914
        %916 = vrot.lane.b32.xlu0 %v515, 48
        %v917 = vpop.permute.xlu0 %916
        %918 = vrot.lane.b32.xlu0 %v477, 48
        %v919 = vpop.permute.xlu0 %918
        %936 = vrot.lane.b32.xlu0 %v555, 56
        %v937 = vpop.permute.xlu0 %936
        %938 = vrot.lane.b32.xlu0 %v557, 56
        %v939 = vpop.permute.xlu0 %938
        %940 = vrot.lane.b32.xlu0 %v560, 56
        %v941 = vpop.permute.xlu0 %940
        %942 = vrot.lane.b32.xlu0 %v562, 56
        %v943 = vpop.permute.xlu0 %942
        %944 = vrot.lane.b32.xlu0 %v565, 56
        %v945 = vpop.permute.xlu0 %944
        %946 = vrot.lane.b32.xlu0 %v567, 56
        %v947 = vpop.permute.xlu0 %946
        %948 = vrot.lane.b32.xlu0 %v570, 56
        %v949 = vpop.permute.xlu0 %948
        %950 = vrot.lane.b32.xlu0 %v572, 56
        %v951 = vpop.permute.xlu0 %950
        %952 = vrot.lane.b32.xlu0 %v575, 56
        %v953 = vpop.permute.xlu0 %952
        %954 = vrot.lane.b32.xlu0 %v577, 56
        %v955 = vpop.permute.xlu0 %954
        %956 = vrot.lane.b32.xlu0 %v580, 56
        %v957 = vpop.permute.xlu0 %956
        %958 = vrot.lane.b32.xlu0 %v582, 56
        %v959 = vpop.permute.xlu0 %958
        %960 = vrot.lane.b32.xlu0 %v628, 56
        %v961 = vpop.permute.xlu0 %960
        %962 = vrot.lane.b32.xlu0 %v630, 56
        %v963 = vpop.permute.xlu0 %962
        %964 = vrot.lane.b32.xlu0 %v640, 56
        %v965 = vpop.permute.xlu0 %964
        %966 = vrot.lane.b32.xlu0 %v642, 56
        %v967 = vpop.permute.xlu0 %966
        %984 = vrot.lane.b32.xlu0 %v596, 64
        %v985 = vpop.permute.xlu0 %984
        %986 = vrot.lane.b32.xlu0 %v598, 64
        %v987 = vpop.permute.xlu0 %986
        %988 = vrot.lane.b32.xlu0 %v601, 64
        %v989 = vpop.permute.xlu0 %988
        %990 = vrot.lane.b32.xlu0 %v603, 64
        %v991 = vpop.permute.xlu0 %990
        %992 = vrot.lane.b32.xlu0 %v606, 64
        %v993 = vpop.permute.xlu0 %992
        %994 = vrot.lane.b32.xlu0 %v608, 64
        %v995 = vpop.permute.xlu0 %994
        %996 = vrot.lane.b32.xlu0 %v611, 64
        %v997 = vpop.permute.xlu0 %996
        %998 = vrot.lane.b32.xlu0 %v613, 64
        %v999 = vpop.permute.xlu0 %998
        %1000 = vrot.lane.b32.xlu0 %v616, 64
        %v1001 = vpop.permute.xlu0 %1000
        %1002 = vrot.lane.b32.xlu0 %v618, 64
        %v1003 = vpop.permute.xlu0 %1002
        %1004 = vrot.lane.b32.xlu0 %v621, 64
        %v1005 = vpop.permute.xlu0 %1004
        %1006 = vrot.lane.b32.xlu0 %v623, 64
        %v1007 = vpop.permute.xlu0 %1006
        %1008 = vrot.lane.b32.xlu0 %v633, 64
        %v1009 = vpop.permute.xlu0 %1008
        %1010 = vrot.lane.b32.xlu0 %v635, 64
        %v1011 = vpop.permute.xlu0 %1010
        %1012 = vrot.lane.b32.xlu0 %v645, 64
        %v1013 = vpop.permute.xlu0 %1012
        %1014 = vrot.lane.b32.xlu0 %v647, 64
        %v1015 = vpop.permute.xlu0 %1014
        %vm1032 = vcmask 64512
        %v1033 = vsel %vm1032, %v506, %v649
        %v1034 = vsel %vm1032, %v450, %v651
        %v1035 = vsel %vm1032, %v507, %v653
        %v1036 = vsel %vm1032, %v453, %v655
        %v1037 = vsel %vm1032, %v508, %v657
        %v1038 = vsel %vm1032, %v456, %v659
        %v1039 = vsel %vm1032, %v509, %v661
        %v1040 = vsel %vm1032, %v459, %v663
        %v1041 = vsel %vm1032, %v510, %v665
        %v1042 = vsel %vm1032, %v462, %v667
        %v1043 = vsel %vm1032, %v511, %v669
        %v1044 = vsel %vm1032, %v465, %v671
        %v1045 = vsel %vm1032, %v512, %v673
        %v1046 = vsel %vm1032, %v468, %v675
        %v1047 = vsel %vm1032, %v513, %v677
        %v1048 = vsel %vm1032, %v471, %v679
        %vm1049 = vcmask 130048
        %v1050 = vsel %vm1049, %v1033, %v697
        %v1051 = vsel %vm1049, %v1034, %v699
        %v1052 = vsel %vm1049, %v1035, %v701
        %v1053 = vsel %vm1049, %v1036, %v703
        %v1054 = vsel %vm1049, %v1037, %v705
        %v1055 = vsel %vm1049, %v1038, %v707
        %v1056 = vsel %vm1049, %v1039, %v709
        %v1057 = vsel %vm1049, %v1040, %v711
        %v1058 = vsel %vm1049, %v1041, %v713
        %v1059 = vsel %vm1049, %v1042, %v715
        %v1060 = vsel %vm1049, %v1043, %v717
        %v1061 = vsel %vm1049, %v1044, %v719
        %v1062 = vsel %vm1049, %v1045, %v721
        %v1063 = vsel %vm1049, %v1046, %v723
        %v1064 = vsel %vm1049, %v1047, %v725
        %v1065 = vsel %vm1049, %v1048, %v727
        %vm1066 = vcmask 195584
        %v1067 = vsel %vm1066, %v1050, %v745
        %v1068 = vsel %vm1066, %v1051, %v747
        %v1069 = vsel %vm1066, %v1052, %v749
        %v1070 = vsel %vm1066, %v1053, %v751
        %v1071 = vsel %vm1066, %v1054, %v753
        %v1072 = vsel %vm1066, %v1055, %v755
        %v1073 = vsel %vm1066, %v1056, %v757
        %v1074 = vsel %vm1066, %v1057, %v759
        %v1075 = vsel %vm1066, %v1058, %v761
        %v1076 = vsel %vm1066, %v1059, %v763
        %v1077 = vsel %vm1066, %v1060, %v765
        %v1078 = vsel %vm1066, %v1061, %v767
        %v1079 = vsel %vm1066, %v1062, %v769
        %v1080 = vsel %vm1066, %v1063, %v771
        %v1081 = vsel %vm1066, %v1064, %v773
        %v1082 = vsel %vm1066, %v1065, %v775
        %vm1083 = vcmask 261120
        %v1084 = vsel %vm1083, %v1067, %v793
        %v1085 = vsel %vm1083, %v1068, %v795
        %v1086 = vsel %vm1083, %v1069, %v797
        %v1087 = vsel %vm1083, %v1070, %v799
        %v1088 = vsel %vm1083, %v1071, %v801
        %v1089 = vsel %vm1083, %v1072, %v803
        %v1090 = vsel %vm1083, %v1073, %v805
        %v1091 = vsel %vm1083, %v1074, %v807
        %v1092 = vsel %vm1083, %v1075, %v809
        %v1093 = vsel %vm1083, %v1076, %v811
        %v1094 = vsel %vm1083, %v1077, %v813
        %v1095 = vsel %vm1083, %v1078, %v815
        %v1096 = vsel %vm1083, %v1079, %v817
        %v1097 = vsel %vm1083, %v1080, %v819
        %v1098 = vsel %vm1083, %v1081, %v821
        %v1099 = vsel %vm1083, %v1082, %v823
        %vm1100 = vcmask 326656
        %v1101 = vsel %vm1100, %v1084, %v841
        %v1102 = vsel %vm1100, %v1085, %v843
        %v1103 = vsel %vm1100, %v1086, %v845
        %v1104 = vsel %vm1100, %v1087, %v847
        %v1105 = vsel %vm1100, %v1088, %v849
        %v1106 = vsel %vm1100, %v1089, %v851
        %v1107 = vsel %vm1100, %v1090, %v853
        %v1108 = vsel %vm1100, %v1091, %v855
        %v1109 = vsel %vm1100, %v1092, %v857
        %v1110 = vsel %vm1100, %v1093, %v859
        %v1111 = vsel %vm1100, %v1094, %v861
        %v1112 = vsel %vm1100, %v1095, %v863
        %v1113 = vsel %vm1100, %v1096, %v865
        %v1114 = vsel %vm1100, %v1097, %v867
        %v1115 = vsel %vm1100, %v1098, %v869
        %v1116 = vsel %vm1100, %v1099, %v871
        %vm1117 = vcmask 392192
        %v1118 = vsel %vm1117, %v1101, %v889
        %v1119 = vsel %vm1117, %v1102, %v891
        %v1120 = vsel %vm1117, %v1103, %v893
        %v1121 = vsel %vm1117, %v1104, %v895
        %v1122 = vsel %vm1117, %v1105, %v897
        %v1123 = vsel %vm1117, %v1106, %v899
        %v1124 = vsel %vm1117, %v1107, %v901
        %v1125 = vsel %vm1117, %v1108, %v903
        %v1126 = vsel %vm1117, %v1109, %v905
        %v1127 = vsel %vm1117, %v1110, %v907
        %v1128 = vsel %vm1117, %v1111, %v909
        %v1129 = vsel %vm1117, %v1112, %v911
        %v1130 = vsel %vm1117, %v1113, %v913
        %v1131 = vsel %vm1117, %v1114, %v915
        %v1132 = vsel %vm1117, %v1115, %v917
        %v1133 = vsel %vm1117, %v1116, %v919
        %vm1134 = vcmask 457728
        %v1135 = vsel %vm1134, %v1118, %v937
        %v1136 = vsel %vm1134, %v1119, %v939
        %v1137 = vsel %vm1134, %v1120, %v941
        %v1138 = vsel %vm1134, %v1121, %v943
        %v1139 = vsel %vm1134, %v1122, %v945
        %v1140 = vsel %vm1134, %v1123, %v947
        %v1141 = vsel %vm1134, %v1124, %v949
        %v1142 = vsel %vm1134, %v1125, %v951
        %v1143 = vsel %vm1134, %v1126, %v953
        %v1144 = vsel %vm1134, %v1127, %v955
        %v1145 = vsel %vm1134, %v1128, %v957
        %v1146 = vsel %vm1134, %v1129, %v959
        %v1147 = vsel %vm1134, %v1130, %v961
        %v1148 = vsel %vm1134, %v1131, %v963
        %v1149 = vsel %vm1134, %v1132, %v965
        %v1150 = vsel %vm1134, %v1133, %v967
        %vm1151 = vcmask 523264
        %v1152 = vsel %vm1151, %v1135, %v985
        %v1153 = vsel %vm1151, %v1136, %v987
        %v1154 = vsel %vm1151, %v1137, %v989
        %v1155 = vsel %vm1151, %v1138, %v991
        %v1156 = vsel %vm1151, %v1139, %v993
        %v1157 = vsel %vm1151, %v1140, %v995
        %v1158 = vsel %vm1151, %v1141, %v997
        %v1159 = vsel %vm1151, %v1142, %v999
        %v1160 = vsel %vm1151, %v1143, %v1001
        %v1161 = vsel %vm1151, %v1144, %v1003
        %v1162 = vsel %vm1151, %v1145, %v1005
        %v1163 = vsel %vm1151, %v1146, %v1007
        %v1164 = vsel %vm1151, %v1147, %v1009
        %v1165 = vsel %vm1151, %v1148, %v1011
        %v1166 = vsel %vm1151, %v1149, %v1013
        %v1167 = vsel %vm1151, %v1150, %v1015
        %v1168 = vpack.c.bf16 %v1153, %v1152
        %v1169 = vpack.c.bf16 %v1155, %v1154
        %v1170 = vpack.c.bf16 %v1157, %v1156
        %v1171 = vpack.c.bf16 %v1159, %v1158
        %v1172 = vpack.c.bf16 %v1161, %v1160
        %v1173 = vpack.c.bf16 %v1163, %v1162
        %v1174 = vpack.c.bf16 %v1165, %v1164
        %v1175 = vpack.c.bf16 %v1167, %v1166
        %v1176 = vld [vmem:[%s3] sm:$0xf]
        %v1177 = vld [vmem:[%s3 + $0x4] sm:$0xf]
        %v1178 = vld [vmem:[%s3 + $0x8] sm:$0xf]
        %v1179 = vld [vmem:[%s3 + $0xc] sm:$0xf]
        %v1180 = vld [vmem:[%s3 + $0x10] sm:$0xf]
        %v1181 = vld [vmem:[%s3 + $0x14] sm:$0xf]
        %v1182 = vld [vmem:[%s3 + $0x18] sm:$0xf]
        %v1183 = vld [vmem:[%s3 + $0x1c] sm:$0xf]
        %v1184 = vld [vmem:[%s3 + $0x20] sm:$0xf]
        %v1194 = vunpack.c.l.b16 %v1176
        %v1195 = vunpack.c.l.b16 %v1177
        %v1196 = vunpack.c.l.b16 %v1178
        %v1197 = vunpack.c.l.b16 %v1179
        %v1198 = vunpack.c.l.b16 %v1180
        %v1199 = vunpack.c.l.b16 %v1181
        %v1200 = vunpack.c.l.b16 %v1182
        %v1201 = vunpack.c.l.b16 %v1183
        %v1202 = vunpack.c.l.b16 %v1184
        %v1203 = vpack.c.b16 %v1195, %v1194
        %v1204 = vpack.c.b16 %v1197, %v1196
        %v1205 = vpack.c.b16 %v1199, %v1198
        %v1206 = vpack.c.b16 %v1201, %v1200
        %v1207 = vpack.c.b16 %v1202, %v1202
        %vm1212 = vcmask 588800
        %v1214 = vsel %vm1212, %v1168, 0
        %v1217 = vsel %vm1212, %v1169, 0
        %v1220 = vsel %vm1212, %v1170, 0
        %v1223 = vsel %vm1212, %v1171, 0
        %v1226 = vsel %vm1212, %v1172, 0
        %v1229 = vsel %vm1212, %v1173, 0
        %v1232 = vsel %vm1212, %v1174, 0
        %v1235 = vsel %vm1212, %v1175, 0
        %vm1237 = vcmask 1043456
        %v1239 = vsel %vm1237, %v1207, 0
        %1241 = vmatprep.subr.bf16.mxu0 0
        %1242 = vmatpush1.bf16.msra.mxu0 %v1203
        %1243 = vmatprep.subr.bf16.mxu0 0
        %1244 = vmatpush1.bf16.msra.mxu0 %v1204
        %1245 = vmatprep.subr.bf16.mxu0 0
        %1246 = vmatpush1.bf16.msra.mxu0 %v1205
        %1247 = vmatprep.subr.bf16.mxu0 0
        %1248 = vmatpush1.bf16.msra.mxu0 %v1206
        %1249 = vmatprep.subr.bf16.mxu0 0
        %1250 = vmatpush1.bf16.msra.mxu0 %v1239
        %1251 = vmatprep.subr.bf16.mxu0 0
        %1252 = vmatpush1.bf16.msra.mxu0 0
        %1253 = vmatprep.subr.bf16.mxu0 0
        %1254 = vmatpush1.bf16.msra.mxu0 0
        %1255 = vmatprep.subr.bf16.mxu0 0
        %1256 = vmatpush1.bf16.msra.mxu0 0
        %1257 = vmatprep.subr.bf16.mxu0 0
        %1258 = vmatpush1.bf16.msra.mxu0 0
        %1259 = vmatprep.subr.bf16.mxu0 0
        %1260 = vmatpush1.bf16.msra.mxu0 0
        %1261 = vmatprep.subr.bf16.mxu0 0
        %1262 = vmatpush1.bf16.msra.mxu0 0
        %1263 = vmatprep.subr.bf16.mxu0 0
        %1264 = vmatpush1.bf16.msra.mxu0 0
        %1265 = vmatprep.subr.bf16.mxu0 0
        %1266 = vmatpush1.bf16.msra.mxu0 0
        %1267 = vmatprep.subr.bf16.mxu0 0
        %1268 = vmatpush1.bf16.msra.mxu0 0
        %1269 = vmatprep.subr.bf16.mxu0 0
        %1270 = vmatpush1.bf16.msra.mxu0 0
        %1271 = vmatprep.subr.bf16.mxu0 0
        %1272 = vmatpush1.bf16.msra.mxu0 0
        %1273 = vmatprep.mubr.bf16.mxu0 0
        %1274 = vmatmul.mubr.bf16.gmra.mrb[0].mxu0 %v1214
        %v1275 = vpop.f32.mrb[0].mxu0
        %v1276 = vadd.f32 0.0, %v1275
        %v1277 = vpop.f32.mrb[0].mxu0
        %v1278 = vpop.f32.mrb[0].mxu0
        %v1279 = vadd.f32 0.0, %v1278
        %v1280 = vpop.f32.mrb[0].mxu0
        %1281 = vmatprep.mubr.bf16.mxu0 0
        %1282 = vmatmul.mubr.bf16.gmra.mrb[0].mxu0 %v1217
        %v1283 = vpop.f32.mrb[0].mxu0
        %v1284 = vadd.f32 0.0, %v1283
        %v1285 = vpop.f32.mrb[0].mxu0
        %v1286 = vpop.f32.mrb[0].mxu0
        %v1287 = vadd.f32 0.0, %v1286
        %v1288 = vpop.f32.mrb[0].mxu0
        %1289 = vmatprep.mubr.bf16.mxu0 0
        %1290 = vmatmul.mubr.bf16.gmra.mrb[0].mxu0 %v1220
        %v1291 = vpop.f32.mrb[0].mxu0
        %v1292 = vadd.f32 0.0, %v1291
        %v1293 = vpop.f32.mrb[0].mxu0
        %v1294 = vpop.f32.mrb[0].mxu0
        %v1295 = vadd.f32 0.0, %v1294
        %v1296 = vpop.f32.mrb[0].mxu0
        %1297 = vmatprep.mubr.bf16.mxu0 0
        %1298 = vmatmul.mubr.bf16.gmra.mrb[0].mxu0 %v1223
        %v1299 = vpop.f32.mrb[0].mxu0
        %v1300 = vadd.f32 0.0, %v1299
        %v1301 = vpop.f32.mrb[0].mxu0
        %v1302 = vpop.f32.mrb[0].mxu0
        %v1303 = vadd.f32 0.0, %v1302
        %v1304 = vpop.f32.mrb[0].mxu0
        %1305 = vmatprep.mubr.bf16.mxu0 0
        %1306 = vmatmul.mubr.bf16.gmra.mrb[0].mxu0 %v1226
        %v1307 = vpop.f32.mrb[0].mxu0
        %v1308 = vadd.f32 0.0, %v1307
        %v1309 = vpop.f32.mrb[0].mxu0
        %v1310 = vpop.f32.mrb[0].mxu0
        %v1311 = vadd.f32 0.0, %v1310
        %v1312 = vpop.f32.mrb[0].mxu0
        %1313 = vmatprep.mubr.bf16.mxu0 0
        %1314 = vmatmul.mubr.bf16.gmra.mrb[0].mxu0 %v1229
        %v1315 = vpop.f32.mrb[0].mxu0
        %v1316 = vadd.f32 0.0, %v1315
        %v1317 = vpop.f32.mrb[0].mxu0
        %v1318 = vpop.f32.mrb[0].mxu0
        %v1319 = vadd.f32 0.0, %v1318
        %v1320 = vpop.f32.mrb[0].mxu0
        %1321 = vmatprep.mubr.bf16.mxu0 0
        %1322 = vmatmul.mubr.bf16.gmra.mrb[0].mxu0 %v1232
        %v1323 = vpop.f32.mrb[0].mxu0
        %v1324 = vadd.f32 0.0, %v1323
        %v1325 = vpop.f32.mrb[0].mxu0
        %v1326 = vpop.f32.mrb[0].mxu0
        %v1327 = vadd.f32 0.0, %v1326
        %v1328 = vpop.f32.mrb[0].mxu0
        %1329 = vmatprep.mubr.bf16.mxu0 0
        %1330 = vmatmul.mubr.bf16.gmra.mrb[0].mxu0 %v1235
        %v1331 = vpop.f32.mrb[0].mxu0
        %v1332 = vadd.f32 0.0, %v1331
        %v1333 = vpop.f32.mrb[0].mxu0
        %v1334 = vpop.f32.mrb[0].mxu0
        %v1335 = vadd.f32 0.0, %v1334
        %v1336 = vpop.f32.mrb[0].mxu0
        %1337 = vdwg.mxu0
        %1338 = vmatprep.subr.mxu0 0.0
        %1339 = vmatpush1.msra.mxu0 %v1276
        %1340 = vmatprep.subr.mxu0 0.0
        %1341 = vmatpush1.msra.mxu0 %v1279
        %1342 = vmatprep.subr.mxu0 0.0
        %1343 = vmatpush1.msra.mxu0 %v1284
        %1344 = vmatprep.subr.mxu0 0.0
        %1345 = vmatpush1.msra.mxu0 %v1287
        %1346 = vmatprep.subr.mxu0 0.0
        %1347 = vmatpush1.msra.mxu0 %v1292
        %1348 = vmatprep.subr.mxu0 0.0
        %1349 = vmatpush1.msra.mxu0 %v1295
        %1350 = vmatprep.subr.mxu0 0.0
        %1351 = vmatpush1.msra.mxu0 %v1300
        %1352 = vmatprep.subr.mxu0 0.0
        %1353 = vmatpush1.msra.mxu0 %v1303
        %1354 = vmatprep.subr.mxu0 0.0
        %1355 = vmatpush1.msra.mxu0 %v1308
        %1356 = vmatprep.subr.mxu0 0.0
        %1357 = vmatpush1.msra.mxu0 %v1311
        %1358 = vmatprep.subr.mxu0 0.0
        %1359 = vmatpush1.msra.mxu0 %v1316
        %1360 = vmatprep.subr.mxu0 0.0
        %1361 = vmatpush1.msra.mxu0 %v1319
        %1362 = vmatprep.subr.mxu0 0.0
        %1363 = vmatpush1.msra.mxu0 %v1324
        %1364 = vmatprep.subr.mxu0 0.0
        %1365 = vmatpush1.msra.mxu0 %v1327
        %1366 = vmatprep.subr.mxu0 0.0
        %1367 = vmatpush1.msra.mxu0 %v1332
        %1368 = vmatprep.subr.mxu0 0.0
        %1369 = vmatpush1.msra.mxu0 %v1335
        %1370 = vmatprep.subr.mxu0 0.0
        %1371 = vmatpush1.msra.mxu0 0.0
        %1372 = vmatprep.subr.mxu0 0.0
        %1373 = vmatpush1.msra.mxu0 0.0
        %1374 = vmatprep.subr.mxu0 0.0
        %1375 = vmatpush1.msra.mxu0 0.0
        %1376 = vmatprep.subr.mxu0 0.0
        %1377 = vmatpush1.msra.mxu0 0.0
        %1378 = vmatprep.subr.mxu0 0.0
        %1379 = vmatpush1.msra.mxu0 0.0
        %1380 = vmatprep.subr.mxu0 0.0
        %1381 = vmatpush1.msra.mxu0 0.0
        %1382 = vmatprep.subr.mxu0 0.0
        %1383 = vmatpush1.msra.mxu0 0.0
        %1384 = vmatprep.subr.mxu0 0.0
        %1385 = vmatpush1.msra.mxu0 0.0
        %1386 = vmatprep.subr.mxu0 0.0
        %1387 = vmatpush1.msra.mxu0 0.0
        %1388 = vmatprep.subr.mxu0 0.0
        %1389 = vmatpush1.msra.mxu0 0.0
        %1390 = vmatprep.subr.mxu0 0.0
        %1391 = vmatpush1.msra.mxu0 0.0
        %1392 = vmatprep.subr.mxu0 0.0
        %1393 = vmatpush1.msra.mxu0 0.0
        %1394 = vmatprep.subr.mxu0 0.0
        %1395 = vmatpush1.msra.mxu0 0.0
        %1396 = vmatprep.subr.mxu0 0.0
        %1397 = vmatpush1.msra.mxu0 0.0
        %1398 = vmatprep.subr.mxu0 0.0
        %1399 = vmatpush1.msra.mxu0 0.0
        %1400 = vmatprep.subr.mxu0 0.0
        %1401 = vmatpush1.msra.mxu0 0.0
        %1402 = vmatprep.mubr.f32.mxu0 0.0
        %1403 = vmatmul.mubr.f32.gmra.mrb[0].mxu0 1.0
        %v1404 = vpop.f32.mrb[0].mxu0
        %v1405 = vadd.f32 0.0, %v1404
        %v1406 = vpop.f32.mrb[0].mxu0
        %1407 = vdwg.mxu0
        %v1408 = vmul.f32 %v1276, %v1276
        %v1409 = vmul.f32 %v1279, %v1279
        %v1410 = vmul.f32 %v1284, %v1284
        %v1411 = vmul.f32 %v1287, %v1287
        %v1412 = vmul.f32 %v1292, %v1292
        %v1413 = vmul.f32 %v1295, %v1295
        %v1414 = vmul.f32 %v1300, %v1300
        %v1415 = vmul.f32 %v1303, %v1303
        %v1416 = vmul.f32 %v1308, %v1308
        %v1417 = vmul.f32 %v1311, %v1311
        %v1418 = vmul.f32 %v1316, %v1316
        %v1419 = vmul.f32 %v1319, %v1319
        %v1420 = vmul.f32 %v1324, %v1324
        %v1421 = vmul.f32 %v1327, %v1327
        %v1422 = vmul.f32 %v1332, %v1332
        %v1423 = vmul.f32 %v1335, %v1335
        %1424 = vmatprep.subr.mxu0 0.0
        %1425 = vmatpush1.msra.mxu0 %v1408
        %1426 = vmatprep.subr.mxu0 0.0
        %1427 = vmatpush1.msra.mxu0 %v1409
        %1428 = vmatprep.subr.mxu0 0.0
        %1429 = vmatpush1.msra.mxu0 %v1410
        %1430 = vmatprep.subr.mxu0 0.0
        %1431 = vmatpush1.msra.mxu0 %v1411
        %1432 = vmatprep.subr.mxu0 0.0
        %1433 = vmatpush1.msra.mxu0 %v1412
        %1434 = vmatprep.subr.mxu0 0.0
        %1435 = vmatpush1.msra.mxu0 %v1413
        %1436 = vmatprep.subr.mxu0 0.0
        %1437 = vmatpush1.msra.mxu0 %v1414
        %1438 = vmatprep.subr.mxu0 0.0
        %1439 = vmatpush1.msra.mxu0 %v1415
        %1440 = vmatprep.subr.mxu0 0.0
        %1441 = vmatpush1.msra.mxu0 %v1416
        %1442 = vmatprep.subr.mxu0 0.0
        %1443 = vmatpush1.msra.mxu0 %v1417
        %1444 = vmatprep.subr.mxu0 0.0
        %1445 = vmatpush1.msra.mxu0 %v1418
        %1446 = vmatprep.subr.mxu0 0.0
        %1447 = vmatpush1.msra.mxu0 %v1419
        %1448 = vmatprep.subr.mxu0 0.0
        %1449 = vmatpush1.msra.mxu0 %v1420
        %1450 = vmatprep.subr.mxu0 0.0
        %1451 = vmatpush1.msra.mxu0 %v1421
        %1452 = vmatprep.subr.mxu0 0.0
        %1453 = vmatpush1.msra.mxu0 %v1422
        %1454 = vmatprep.subr.mxu0 0.0
        %1455 = vmatpush1.msra.mxu0 %v1423
        %1456 = vmatprep.subr.mxu0 0.0
        %1457 = vmatpush1.msra.mxu0 0.0
        %1458 = vmatprep.subr.mxu0 0.0
        %1459 = vmatpush1.msra.mxu0 0.0
        %1460 = vmatprep.subr.mxu0 0.0
        %1461 = vmatpush1.msra.mxu0 0.0
        %1462 = vmatprep.subr.mxu0 0.0
        %1463 = vmatpush1.msra.mxu0 0.0
        %1464 = vmatprep.subr.mxu0 0.0
        %1465 = vmatpush1.msra.mxu0 0.0
        %1466 = vmatprep.subr.mxu0 0.0
        %1467 = vmatpush1.msra.mxu0 0.0
        %1468 = vmatprep.subr.mxu0 0.0
        %1469 = vmatpush1.msra.mxu0 0.0
        %1470 = vmatprep.subr.mxu0 0.0
        %1471 = vmatpush1.msra.mxu0 0.0
        %1472 = vmatprep.subr.mxu0 0.0
        %1473 = vmatpush1.msra.mxu0 0.0
        %1474 = vmatprep.subr.mxu0 0.0
        %1475 = vmatpush1.msra.mxu0 0.0
        %1476 = vmatprep.subr.mxu0 0.0
        %1477 = vmatpush1.msra.mxu0 0.0
        %1478 = vmatprep.subr.mxu0 0.0
        %1479 = vmatpush1.msra.mxu0 0.0
        %1480 = vmatprep.subr.mxu0 0.0
        %1481 = vmatpush1.msra.mxu0 0.0
        %1482 = vmatprep.subr.mxu0 0.0
        %1483 = vmatpush1.msra.mxu0 0.0
        %1484 = vmatprep.subr.mxu0 0.0
        %1485 = vmatpush1.msra.mxu0 0.0
        %1486 = vmatprep.subr.mxu0 0.0
        %1487 = vmatpush1.msra.mxu0 0.0
        %1488 = vmatprep.mubr.f32.mxu0 0.0
        %1489 = vmatmul.mubr.f32.gmra.mrb[0].mxu0 1.0
        %v1490 = vpop.f32.mrb[0].mxu0
        %v1491 = vadd.f32 0.0, %v1490
        %v1492 = vpop.f32.mrb[0].mxu0
        %1493 = vdwg.mxu0
        %1494 = vst [vmem:[%s340] sm:$0xff] %v1276
        %1495 = vst [vmem:[%s340 + $0x8] sm:$0xff] %v1279
        %1496 = vst [vmem:[%s340 + $0x10] sm:$0xff] %v1284
        %1497 = vst [vmem:[%s340 + $0x18] sm:$0xff] %v1287
        %1498 = vst [vmem:[%s340 + $0x20] sm:$0xff] %v1292
        %1499 = vst [vmem:[%s340 + $0x28] sm:$0xff] %v1295
        %1500 = vst [vmem:[%s340 + $0x30] sm:$0xff] %v1300
        %1501 = vst [vmem:[%s340 + $0x38] sm:$0xff] %v1303
        %1502 = vst [vmem:[%s340 + $0x40] sm:$0xff] %v1308
        %1503 = vst [vmem:[%s340 + $0x48] sm:$0xff] %v1311
        %1504 = vst [vmem:[%s340 + $0x50] sm:$0xff] %v1316
        %1505 = vst [vmem:[%s340 + $0x58] sm:$0xff] %v1319
        %1506 = vst [vmem:[%s340 + $0x60] sm:$0xff] %v1324
        %1507 = vst [vmem:[%s340 + $0x68] sm:$0xff] %v1327
        %1508 = vst [vmem:[%s340 + $0x70] sm:$0xff] %v1332
        %1509 = vst [vmem:[%s340 + $0x78] sm:$0xff] %v1335
        %v1511 = vrot.slane %v1491, 7
        %v1513 = vsel %vm447, %v1405, %v1511
        %1514 = vst [vmem:[%s347] sm:$0x3] %v1513
        %s1515 = sand.u32 %s166, 1
        %s1516 = scalar_lea.sflag [#allocation3], %s1515
        %s1517 = sand.u32 %s166, 1
        %s1518 = smul.addr %s1517, 128
        %s1519 = scalar_lea.vmem [#allocation2], %s1518
        %s1520 = sand.u32 %s194, 1
        %s1521 = scalar_lea.sflag [#allocation5], %s1520
        %s1522 = sand.u32 %s194, 1
        %s1523 = smul.addr %s1522, 2
        %s1524 = scalar_lea.vmem [#allocation4], %s1523
        // Predicated region
        $region37: #{tpu_custom_call.1} parent=35 // pred_check
          %p1525 = pneg %p176
        $region38: #{tpu_custom_call.1} parent=35 // pred_check_branch
          %1527 = sbr.rel (%p1525) target = $region40
        $region39: #{tpu_custom_call.1} parent=35 // pred_region
          %s1528 = smul.u32 8, %s28
          %s1530 = ssub.s32 2048, 2048
          %1531 = vsyncadd %s1516, %s1530
          %s1532 = smul.addr %s1528, 2
          %s1533 = smul.addr %s27, 32
          %s1534 = sadd.s32 %s1532, %s1533
          %s1535 = smul.addr %s1534, 128
          %s1536 = scalar_lea.hbm %s4, %s1535
          %s1537 = sshll.u32 %s1519, 4
          %s1538 = int_to_ptr.vmem [resolvable:$true] %s1537
          %1543 = dma.vmem_to_hbm [thread:$0]  %s1538, 2048, %s1536, %s1516, 128, 128, 8
        $region40: #{tpu_custom_call.1} parent=35 // pred_fallthru
          _
        // Predicated region
        $region41: #{tpu_custom_call.1} parent=35 // pred_check
          %p1544 = pneg %p204
        $region42: #{tpu_custom_call.1} parent=35 // pred_check_branch
          %1546 = sbr.rel (%p1544) target = $region44
        $region43: #{tpu_custom_call.1} parent=35 // pred_region
          %s1548 = ssub.s32 32, 32
          %1549 = vsyncadd %s1521, %s1548
          %s1550 = smul.addr %s27, 2
          %s1551 = sadd.s32 %s28, %s1550
          %s1552 = smul.addr %s1551, 32
          %s1553 = scalar_lea.hbm %s5, %s1552
          %s1555 = sshll.u32 %s1524, 4
          %s1556 = int_to_ptr.vmem [resolvable:$true] %s1555
          %1558 = dma.vmem_to_hbm [thread:$0]  %s1556, 32, %s1553, %s1521
        $region44: #{tpu_custom_call.1} parent=35 // pred_fallthru
          _
      $region36: #{tpu_custom_call.1} parent=5 // pred_fallthru
        _
      %p1559 = scmp.le.s32.totalorder 2, %s18
      // Predicated region
      $region45: #{tpu_custom_call.1} parent=5 // pred_check
        %p1560 = pneg %p1559
      $region46: #{tpu_custom_call.1} parent=5 // pred_check_branch
        %1562 = sbr.rel (%p1560) target = $region48
      $region47: #{tpu_custom_call.1} parent=5 // pred_region
        %s1563 = ssub.s32 %s18, 2
        // Predicated region
        $region49: #{tpu_custom_call.1} parent=47 // pred_check
          %p1564 = pneg %p182
        $region50: #{tpu_custom_call.1} parent=47 // pred_check_branch
          %1566 = sbr.rel (%p1564) target = $region52
        $region51: #{tpu_custom_call.1} parent=47 // pred_region
          %s1567 = sand.u32 %s167, 1
          %s1568 = scalar_lea.sflag [#allocation3], %s1567
          %s1569 = sand.u32 %s167, 1
          %s1570 = smul.addr %s1569, 128
          %s1571 = scalar_lea.vmem [#allocation2], %s1570
          %1572 = dma.done %s1568, 2048
        $region52: #{tpu_custom_call.1} parent=47 // pred_fallthru
          _
        // Predicated region
        $region53: #{tpu_custom_call.1} parent=47 // pred_check
          %p1573 = pneg %p210
        $region54: #{tpu_custom_call.1} parent=47 // pred_check_branch
          %1575 = sbr.rel (%p1573) target = $region56
        $region55: #{tpu_custom_call.1} parent=47 // pred_region
          %s1576 = sand.u32 %s195, 1
          %s1577 = scalar_lea.sflag [#allocation5], %s1576
          %s1578 = sand.u32 %s195, 1
          %s1579 = smul.addr %s1578, 2
          %s1580 = scalar_lea.vmem [#allocation4], %s1579
          %1581 = dma.done %s1577, 32
        $region56: #{tpu_custom_call.1} parent=47 // pred_fallthru
          _
      $region48: #{tpu_custom_call.1} parent=5 // pred_fallthru
        _
    $region6: #{tpu_custom_call.1} parent=1 // loop_footer
      %s22 = sadd.s32 1, %s18
    $region7: #{tpu_custom_call.1} parent=1 // loop_footer_branch
      %17 = sbr.rel target = $region3
    $region8: #{tpu_custom_call.1} parent=1 // loop_exit
      _
    %1582 = vsyncpa [#allocation3], 1
    %s1583 = scalar_lea.sflag [#allocation3], 1
    %1584 = vsyncpa %s1583, 1
    %1585 = vsyncpa [#allocation5], 1
    %s1586 = scalar_lea.sflag [#allocation5], 1
    %1587 = vsyncpa %s1586, 1

</llo_original>
